<compile_context>
chip_gen: v5e
topology: v5e:2x2
jax: 0.10.0
libtpu: 0.0.40
codegen_flags: <defaults>
</compile_context>

<pallas_src>
import functools

import jax
import jax.numpy as jnp
from jax.experimental import pallas as pl
from jax.experimental.pallas import tpu as pltpu

_MIN_BYTES_FOR_PALLAS = 1 << 20          # below ~1 MiB moved, grid overhead dominates
_VMEM_BUDGET_BYTES = 32 * 1024 * 1024    # working-set budget (fits v7x 64 MiB physical)


def _round_up(v, m):
    return ((v + m - 1) // m) * m


def _num_tensorcores():
    """Best-effort TensorCore count (v7x megacore = 2). Defaults to 1 (v5e/v6e)."""
    try:
        info = pltpu.get_tpu_info()
        for attr in ("num_cores", "core_count", "tensorcores_per_chip",
                     "num_tensorcores"):
            v = getattr(info, attr, None)
            if isinstance(v, int) and v > 0:
                return v
    except Exception:
        pass
    return 1


def _deconv_kernel(x_ref, w_ref, b_ref, o_ref, *, tr, W, cout2):
    # x_ref: (tr*W, Cin)   w_ref: (Cin, 4*Cout)   b_ref: (1, 4*Cout)
    # o_ref: (tr, 2, W, 2*Cout)   layout = (row, kh, w, kw*Cout + oc)
    acc = jnp.dot(x_ref[...], w_ref[...], preferred_element_type=jnp.float32)
    acc = acc + b_ref[...]
    # Split the sublane (row) dim into (row-line, w).  W % 8 == 0 keeps this
    # tile-aligned, so it is a pure relabeling (no data movement).
    acc = acc.reshape(tr, W, 2 * cout2)
    # (w, kh) interleave folded into the store: kh=0 taps are the low half of the
    # packed columns, kh=1 taps the high half.  The lane slice + the two stores
    # run on VPU/store slots that have large slack in this HBM-bound kernel, and
    # the HBM destination of the output DMA stays fully contiguous.
    lo = acc[:, :, :cout2].reshape(tr, 1, W, cout2)
    hi = acc[:, :, cout2:].reshape(tr, 1, W, cout2)
    o_ref[:, 0:1, :, :] = lo.astype(o_ref.dtype)
    o_ref[:, 1:2, :, :] = hi.astype(o_ref.dtype)


def _pick_row_tile(R, W, cin, ncol, in_itemsize, out_itemsize, row_budget):
    """Pick tr = number of whole-W rows per grid step, and the VMEM footprint."""
    cout2 = ncol // 2
    lane_in = _round_up(cin, 128)      # VMEM lane padding of the x block
    lane_out = _round_up(cout2, 128)   # VMEM lane padding of the output block
    lane_w = _round_up(ncol, 128)

    tr = max(1, min(R, max(1, row_budget // W)))

    # bf16 inputs pack two rows per sublane: keep tr*W a multiple of 16.
    if in_itemsize < 4 and tr > 1 and (tr * W) % 16 != 0:
        tr = max(1, tr - (tr % 2))

    # v7x megacore: >= 2 grid steps per TensorCore so each core keeps
    # double-buffering.  Never force a split on single-core chips (v5e/v6e).
    cores = _num_tensorcores()
    if cores > 1:
        tr = max(1, min(tr, pl.cdiv(R, 2 * cores)))

    def footprint(t):
        x_blk = 2 * t * W * lane_in * in_itemsize                     # double-buffered
        o_blk = 2 * t * 2 * _round_up(W, 8) * lane_out * out_itemsize  # double-buffered
        w_blk = 2 * _round_up(cin, 8) * lane_w * in_itemsize           # grid-invariant
        b_blk = 2 * 8 * lane_w * 4
        return x_blk + o_blk + w_blk + b_blk

    while tr > 1 and footprint(tr) > _VMEM_BUDGET_BYTES:
        tr = max(1, tr // 2)
    return tr, footprint(tr)


def conv_transpose3d_1x2x2_ndhwc(x, weight, bias, *, row_block=1024, out_dtype=None):
    """Channels-last ConvTranspose3d, kernel=(1,2,2), stride=(1,2,2).

    x:      (N, D, H, W, Cin)     -- channels-last (preferred: zero layout glue)
    weight: (Cin, Cout, 1, 2, 2)  -- PyTorch ConvTranspose3d parameter layout
    bias:   (Cout,)
    returns (N, D, 2H, 2W, Cout)

    Precision contract: the MXU dot runs at default TPU matmul precision with
    f32 accumulation; pass out_dtype=jnp.bfloat16 if the downstream stage
    tolerates it (halves the dominant output HBM stream).
    """
    N, D, H, W, Cin = x.shape
    Cout = weight.shape[1]
    R = N * D * H                      # rows of W spatial positions each
    M = R * W
    ncol = 4 * Cout
    cout2 = 2 * Cout
    out_dtype = x.dtype if out_dtype is None else jnp.dtype(out_dtype)

    # Tap-major packed weight: column = kh*(2*Cout) + kw*Cout + oc.
    w_packed = jnp.transpose(weight[:, :, 0, :, :], (0, 2, 3, 1)).reshape(Cin, ncol)
    w_packed = w_packed.astype(x.dtype)   # tiny; match x so the kernel does no promote
    b_packed = jnp.tile(bias, 4).reshape(1, ncol).astype(jnp.float32)

    x_flat = x.reshape(M, Cin)   # free: NDHWC is already row-major (M, Cin)

    in_bytes = M * Cin * x.dtype.itemsize
    out_bytes = M * ncol * jnp.dtype(out_dtype).itemsize
    w_bytes = Cin * ncol * w_packed.dtype.itemsize + ncol * 4
    total_bytes = in_bytes + out_bytes + w_bytes

    if W % 8 == 0 and total_bytes >= _MIN_BYTES_FOR_PALLAS:
        tr, fp = _pick_row_tile(R, W, Cin, ncol, x.dtype.itemsize,
                                jnp.dtype(out_dtype).itemsize, row_block)
        kernel = functools.partial(_deconv_kernel, tr=tr, W=W, cout2=cout2)
        out = pl.pallas_call(
            kernel,
            out_shape=jax.ShapeDtypeStruct((R, 2, W, cout2), out_dtype),
            grid_spec=pltpu.PrefetchScalarGridSpec(
                num_scalar_prefetch=0,
                grid=(pl.cdiv(R, tr),),   # partial last block is masked by Pallas
                in_specs=[
                    pl.BlockSpec((tr * W, Cin), lambda i: (i, 0)),
                    # Grid-invariant weight/bias blocks (fetched once, kept resident).
                    pl.BlockSpec((Cin, ncol), lambda i: (0, 0)),
                    pl.BlockSpec((1, ncol), lambda i: (0, 0)),
                ],
                out_specs=pl.BlockSpec((tr, 2, W, cout2), lambda i: (i, 0, 0, 0)),
            ),
            compiler_params=pltpu.CompilerParams(
                dimension_semantics=("parallel",),
                # Limit derived from the actual footprint (+ headroom), not a fixed
                # constant, so it stays well inside v7x's 64 MiB physical VMEM.
                vmem_limit_bytes=int(min(fp + (4 << 20), 128 << 20)),
            ),
            cost_estimate=pl.CostEstimate(
                flops=2 * M * Cin * ncol,
                transcendentals=0,
                bytes_accessed=total_bytes),
        )(x_flat, w_packed, b_packed)
        # (R, 2, W, 2*Cout) row-major == (N, D, H, kh, W, kw, Cout) row-major,
        # which is exactly (N, D, 2H, 2W, Cout): this reshape is free (no copy).
        return out.reshape(N, D, 2 * H, 2 * W, Cout)

    # Tiny or irregular-W problems: grid/pipeline overhead would dominate, let XLA do it.
    out_flat = (jnp.dot(x_flat.astype(jnp.float32), w_packed.astype(jnp.float32),
                        preferred_element_type=jnp.float32) + b_packed).astype(out_dtype)
    out = out_flat.reshape(N, D, H, W, 2, 2, Cout)
    out = jnp.transpose(out, (0, 1, 2, 4, 3, 5, 6))
    return out.reshape(N, D, 2 * H, 2 * W, Cout)


def conv_transpose3d_1x2x2_pallas(x, weight, bias, **kwargs):
    """NCDHW compatibility wrapper matching the PyTorch module's layout.

    Prefer conv_transpose3d_1x2x2_ndhwc end-to-end: with the H/W interleave now
    folded into the kernel, the NDHWC path has zero post-kernel passes; this
    wrapper adds exactly one layout transpose on each side (the unavoidable
    NCDHW<->NDHWC conversions).
    """
    x_ndhwc = jnp.transpose(x, (0, 2, 3, 4, 1))
    y = conv_transpose3d_1x2x2_ndhwc(x_ndhwc, weight, bias, **kwargs)
    return jnp.transpose(y, (0, 4, 1, 2, 3))


def up_no_skipconn3d_forward(x1, x2, weight, bias):
    # Matches the PyTorch up_no_skipconn3d.forward: the x2 argument is ignored.
    del x2
    return conv_transpose3d_1x2x2_pallas(x1, weight, bias)


def _reference_ncdhw(x, weight, bias):
    # Pure-JAX f32 reference of the transposed conv (kernel == stride, no overlap).
    N, Cin, D, H, W = x.shape
    Cout = weight.shape[1]
    y = jnp.einsum('nidhw,iokl->nodhkwl', x, weight[:, :, 0, :, :],
                   precision=jax.lax.Precision.HIGHEST)
    y = y.reshape(N, Cout, D, 2 * H, 2 * W)
    return y + bias[None, :, None, None, None]


if __name__ == "__main__":
    key = jax.random.PRNGKey(0)
    k_x1, k_x2, k_w, k_b = jax.random.split(key, 4)

    # Shapes consistent with UNet3D's up_no_skipconn3d stage (in=64 -> out=32):
    # R = N*D*H = 128 rows of W=16 positions, 2 (or 4 on megacore) grid steps.
    N, Cin, Cout = 2, 64, 32
    D, H, W = 4, 16, 16

    x1 = jax.random.normal(k_x1, (N, Cin, D, H, W), dtype=jnp.float32)
    x2 = jax.random.normal(k_x2, (N, Cout, D, 2 * H, 2 * W), dtype=jnp.float32)
    # PyTorch ConvTranspose3d parameter layout: weight (in_ch, out_ch, 1, 2, 2).
    weight = 0.1 * jax.random.normal(k_w, (Cin, Cout, 1, 2, 2), dtype=jnp.float32)
    bias = 0.1 * jax.random.normal(k_b, (Cout,), dtype=jnp.float32)

    fwd = jax.jit(up_no_skipconn3d_forward)
    out = jax.block_until_ready(fwd(x1, x2, weight, bias))

    ref = _reference_ncdhw(x1, weight, bias)
    assert out.shape == (N, Cout, D, 2 * H, 2 * W), out.shape
    # Default TPU matmul precision with f32 accumulation vs the HIGHEST-precision
    # reference -> modest tolerance.
    assert jnp.allclose(out, ref, atol=5e-2, rtol=5e-2), (
        f"mismatch vs reference, max abs err = {jnp.max(jnp.abs(out - ref)):.4e}")
    print("KERNEL_OK")
</pallas_src>

<mosaic_0001>
module attributes {stable_mosaic.version = 11 : i64} {
  func.func @_deconv_kernel(%arg0: i32, %arg1: memref<1024x64xf32, #tpu.memory_space<vmem>>, %arg2: memref<64x128xf32, #tpu.memory_space<vmem>>, %arg3: memref<1x128xf32, #tpu.memory_space<vmem>>, %arg4: memref<64x2x16x64xf32, #tpu.memory_space<vmem>>) attributes {dimension_semantics = [#tpu.dimension_semantics<parallel>], iteration_bounds = array<i64: 2>, scalar_prefetch = 0 : i64, scratch_operands = 0 : i64, tpu.core_type = #tpu.core_type<tc>, window_params = [{transform_indices = @transform_0, window_bounds = array<i64: 1024, 64>}, {pipeline_mode = #tpu.pipeline_mode<synchronous>, transform_indices = @transform_1, window_bounds = array<i64: 64, 128>}, {pipeline_mode = #tpu.pipeline_mode<synchronous>, transform_indices = @transform_2, window_bounds = array<i64: 1, 128>}, {transform_indices = @transform_3, window_bounds = array<i64: 64, 2, 16, 64>}]} {
    %c0 = arith.constant 0 : index
    %c0_0 = arith.constant 0 : index
    %0 = vector.load %arg1[%c0, %c0_0] : memref<1024x64xf32, #tpu.memory_space<vmem>>, vector<1024x64xf32>
    %c0_1 = arith.constant 0 : index
    %c0_2 = arith.constant 0 : index
    %1 = vector.load %arg2[%c0_1, %c0_2] : memref<64x128xf32, #tpu.memory_space<vmem>>, vector<64x128xf32>
    %cst = arith.constant dense<0.000000e+00> : vector<1024x128xf32>
    %2 = tpu.matmul %0, %1, %cst {dimension_numbers = #tpu.dot_dimension_numbers<[1], [0], [0], [1], [0, 0, 1, 1], [], []>} : vector<1024x64xf32>, vector<64x128xf32>, vector<1024x128xf32> -> vector<1024x128xf32>
    %c0_3 = arith.constant 0 : index
    %c0_4 = arith.constant 0 : index
    %3 = vector.load %arg3[%c0_3, %c0_4] : memref<1x128xf32, #tpu.memory_space<vmem>>, vector<1x128xf32>
    %4 = vector.broadcast %3 : vector<1x128xf32> to vector<1024x128xf32>
    %5 = arith.addf %2, %4 : vector<1024x128xf32>
    %6 = vector.shape_cast %5 : vector<1024x128xf32> to vector<64x16x128xf32>
    %7 = vector.extract_strided_slice %6 {offsets = [0, 0, 0], sizes = [64, 16, 64], strides = [1, 1, 1]} : vector<64x16x128xf32> to vector<64x16x64xf32>
    %8 = vector.shape_cast %7 : vector<64x16x64xf32> to vector<64x1x16x64xf32>
    %9 = vector.extract_strided_slice %6 {offsets = [0, 0, 64], sizes = [64, 16, 64], strides = [1, 1, 1]} : vector<64x16x128xf32> to vector<64x16x64xf32>
    %10 = vector.shape_cast %9 : vector<64x16x64xf32> to vector<64x1x16x64xf32>
    %c0_5 = arith.constant 0 : index
    %c0_6 = arith.constant 0 : index
    %c0_7 = arith.constant 0 : index
    %c0_8 = arith.constant 0 : index
    %11 = vector.load %arg4[%c0_5, %c0_6, %c0_7, %c0_8] : memref<64x2x16x64xf32, #tpu.memory_space<vmem>>, vector<64x1x16x64xf32>
    tpu.vector_store %arg4[%c0_5, %c0_6, %c0_7, %c0_8], %8 {strides = array<i32>} : memref<64x2x16x64xf32, #tpu.memory_space<vmem>>, vector<64x1x16x64xf32>,
    %c0_9 = arith.constant 0 : index
    %c1 = arith.constant 1 : index
    %c0_10 = arith.constant 0 : index
    %c0_11 = arith.constant 0 : index
    %12 = vector.load %arg4[%c0_9, %c1, %c0_10, %c0_11] : memref<64x2x16x64xf32, #tpu.memory_space<vmem>>, vector<64x1x16x64xf32>
    tpu.vector_store %arg4[%c0_9, %c1, %c0_10, %c0_11], %10 {strides = array<i32>} : memref<64x2x16x64xf32, #tpu.memory_space<vmem>>, vector<64x1x16x64xf32>,
    return
  }
  func.func @transform_0(%arg0: i32) -> (i32, i32) {
    %c0_i32 = arith.constant 0 : i32
    %c0_i32_0 = arith.constant 0 : i32
    return %arg0, %c0_i32 : i32, i32
  }
  func.func @transform_1(%arg0: i32) -> (i32, i32) {
    %c0_i32 = arith.constant 0 : i32
    %c0_i32_0 = arith.constant 0 : i32
    %c0_i32_1 = arith.constant 0 : i32
    return %c0_i32, %c0_i32_0 : i32, i32
  }
  func.func @transform_2(%arg0: i32) -> (i32, i32) {
    %c0_i32 = arith.constant 0 : i32
    %c0_i32_0 = arith.constant 0 : i32
    %c0_i32_1 = arith.constant 0 : i32
    return %c0_i32, %c0_i32_0 : i32, i32
  }
  func.func @transform_3(%arg0: i32) -> (i32, i32, i32, i32) {
    %c0_i32 = arith.constant 0 : i32
    %c0_i32_0 = arith.constant 0 : i32
    %c0_i32_1 = arith.constant 0 : i32
    %c0_i32_2 = arith.constant 0 : i32
    return %arg0, %c0_i32, %c0_i32_0, %c0_i32_1 : i32, i32, i32, i32
  }
}

</mosaic_0001>

<llo_original>
// kernel: tile.9
$region0: #{tile.9}
  %s0 = inlined_call_operand.vmem [shape: f32[4,32], index: 0, kind: input, shape index: {}]
  %s1 = inlined_call_operand.vmem [shape: f32[1,128], index: 1, kind: output, shape index: {}]
  $region1: #{tile.9} parent=0
    #allocation0 [shape = 'u8[4096]{0}', space=vmem, size = 0x1000, scoped, tag = 'scoped mem for output reshape']
    #allocation1 [shape = 'u8[4096]{0}', space=vmem, size = 0x1000, scoped, tag = 'scoped mem for input reshape']
    %s3 = ssub.s32 16, 1
    %v4 = vld [vmem:[%s0] sm:%s3]
    %5 = vst [vmem:[#allocation1] sm:%s3] %v4
    %v6 = vld [vmem:[#allocation1] sm:$0x1]
    %vm7 = vcmask 261120
    %8 = vst.msk [vmem:[#allocation0] sm:$0x1] %vm7, %v6
    %s9 = scalar_lea.vmem [#allocation1], 3
    %v10 = vld [vmem:[%s9] sm:$0x1]
    %11 = vrot.lane.b32.xlu0 %v10, 96
    %v12 = vpop.permute.xlu0 %11
    %vm13 = vcmask 1048320
    %14 = vst.msk [vmem:[#allocation0] sm:$0x1] %vm13, %v12
    %s15 = scalar_lea.vmem [#allocation1], 2
    %v16 = vld [vmem:[%s15] sm:$0x1]
    %17 = vrot.lane.b32.xlu0 %v16, 64
    %v18 = vpop.permute.xlu0 %17
    %vm19 = vcmask 785920
    %20 = vst.msk [vmem:[#allocation0] sm:$0x1] %vm19, %v18
    %s21 = scalar_lea.vmem [#allocation1], 1
    %v22 = vld [vmem:[%s21] sm:$0x1]
    %23 = vrot.lane.b32.xlu0 %v22, 32
    %v24 = vpop.permute.xlu0 %23
    %vm25 = vcmask 523520
    %26 = vst.msk [vmem:[#allocation0] sm:$0x1] %vm25, %v24
    %s28 = ssub.s32 2, 1
    %v29 = vld [vmem:[#allocation0] sm:%s28]
    %s31 = ssub.s32 2, 1
    %32 = vst [vmem:[%s1] sm:%s31] %v29

// kernel: tile.8
$region0: #{tile.8}
  #allocation2 [shape = 's32[1]{0}', space=sflag, size = 0x4, scoped, tag = 'scoped memory for tile.8']
  %s0 = inlined_call_operand.hbm [shape: f32[32], index: 0, kind: input, shape index: {}]
  %s1 = inlined_call_operand.vmem [shape: f32[4,32], index: 1, kind: output, shape index: {}]
  $region1: #{tile.8} parent=0
    #allocation0 [shape = 'u8[512]{0}', space=vmem, size = 0x400, scoped, tag = 'operand span for operand 0']
    #allocation1 [shape = 's32[1]{0}', space=sflag, size = 0x4, scoped, tag = 'scoped memory for tile.8']
    %2 = vsyncpa [#allocation1], 0
    // Predicated region
    $region2: #{tile.8} parent=1 // pred_check
      _
    $region3: #{tile.8} parent=1 // pred_check_branch
      %4 = sbr.rel (0) target = $region5
    $region4: #{tile.8} parent=1 // pred_region
      %6 = vsyncadd [#allocation1], 0
      %s8 = sshll.u32 %s0, 4
      %s9 = int_to_ptr.hbm [resolvable:$true] %s8
      %s10 = sshll.u32 [#allocation0], 4
      %s11 = int_to_ptr.vmem [resolvable:$true] %s10
      %13 = dma.hbm_to_vmem [thread:$0]  %s9, 16, %s11, [#allocation1]
    $region5: #{tile.8} parent=1 // pred_fallthru
      _
    // Predicated region
    $region6: #{tile.8} parent=1 // pred_check
      _
    $region7: #{tile.8} parent=1 // pred_check_branch
      %15 = sbr.rel (0) target = $region9
    $region8: #{tile.8} parent=1 // pred_region
      %17 = dma.done [#allocation1], 16
    $region9: #{tile.8} parent=1 // pred_fallthru
      _
    %v18 = vld [vmem:[#allocation0] ss:$0 sm:$0xff]
    %19 = vst [vmem:[%s1] sm:$0xf] %v18
    %20 = vsyncpa [#allocation1], 1

// kernel: up_no_skipconn3d_forward.1
$region0: #{up_no_skipconn3d_forward.1}
  #allocation0 [shape = 'u32[]', space=smem, size = 0x4, offset = 0x4, fixed_abs, tag = 'smem constant byte address 0x4 - core index']
  #allocation1 [shape = 'u32[72,128]{1,0:T(1,128)}', space=vmem, size = 0x9000, scoped, tag = 'internal scratch']
  %s0 = inlined_call_operand.hbm [shape: f32[2048,64], index: 0, kind: input, shape index: {}]
  %s1 = inlined_call_operand.vmem [shape: f32[64,128], index: 1, kind: input, shape index: {}]
  %s2 = inlined_call_operand.vmem [shape: f32[1,128], index: 2, kind: input, shape index: {}]
  %s3 = inlined_call_operand.vmem [shape: f32[128,2,16,64], index: 3, kind: output, shape index: {}]
  %s4 = sld [smem:[#allocation0]]
  $region49: #{up_no_skipconn3d_forward.1} parent=0
    _
  %s6 = ssub.s32 1, %s4
  %s7 = scalar_select 0, %s6, %s4
  $region1: #{up_no_skipconn3d_forward.1} parent=0
    #allocation2 [shape = 'u8[1048576]{0}', space=vmem, size = 0x100000, scoped, tag = 'input window, operand 0']
    #allocation3 [shape = 's32[2]{0}', space=sflag, size = 0x8, scoped, tag = 'scoped memory for up_no_skipconn3d_forward.1']
    %8 = vsyncpa [#allocation3], 0
    %s9 = scalar_lea.sflag [#allocation3], 1
    %10 = vsyncpa %s9, 0
    loop: start=0, step=1, limit=4
    $region2: #{up_no_skipconn3d_forward.1} parent=1 // loop_pre_header
      _
    $region3: #{up_no_skipconn3d_forward.1} parent=1 // loop_header
      %s12 = sphi 0, %s16
      %p13 = scmp.ge.s32.totalorder %s12, 4
      %s22 = sphi 0, %s24
      %s25 = sphi 0, %s22
      %s26 = sphi 0, %s25
      %s42 = sphi 0, %s26
      %s46 = sphi 0, %s46
      %s48 = sphi 0, %s46
      %s49 = sphi 0, %s48
      %s63 = sphi 0, %s49
      %s67 = sphi 0, %s67
      %s69 = sphi 0, %s67
      %s70 = sphi 0, %s69
      %s84 = sphi 0, %s70
      %s90 = sphi 0, %s92
      %s93 = sphi 0, %s90
      %s94 = sphi 0, %s93
      %s110 = sphi 0, %s94
    $region4: #{up_no_skipconn3d_forward.1} parent=1 // loop_header_branch
      %15 = sbr.rel (%p13) target = $region8
    $region5: #{up_no_skipconn3d_forward.1} parent=1 // loop_body
      %s17 = ssub.s32 %s12, 1
      %s18 = ssub.s32 %s12, 2
      %s19 = sadd.s32 %s12, 1
      %s20 = ssub.s32 %s12, %s19
      %p21 = scmp.eq.s32.totalorder %s20, 0
      %s23 = sadd.s32 %s22, 1
      %s24 = scalar_select %p21, %s22, %s23
      %p27 = pneg %p21
      %p28 = scmp.eq.s32.totalorder %s12, 1
      %p29 = por %p27, %p28
      %p30 = scmp.ne.s32.totalorder %s22, %s25
      %p31 = scmp.eq.s32.totalorder %s12, 0
      %p32 = por %p30, %p31
      %p33 = scmp.ne.s32.totalorder %s22, %s25
      %p34 = scmp.eq.s32.totalorder %s17, 1
      %p35 = por %p33, %p34
      %p36 = scmp.ne.s32.totalorder %s25, %s26
      %p37 = scmp.eq.s32.totalorder %s17, 0
      %p38 = por %p36, %p37
      %p39 = scmp.ne.s32.totalorder %s25, %s26
      %p40 = scmp.eq.s32.totalorder %s18, 1
      %p41 = por %p39, %p40
      %p43 = scmp.ne.s32.totalorder %s26, %s42
      %p44 = scmp.eq.s32.totalorder %s18, 0
      %p45 = por %p43, %p44
      %s47 = sadd.s32 %s46, 1
      %p50 = scmp.eq.s32.totalorder %s12, 1
      %p51 = scmp.ne.s32.totalorder %s46, %s48
      %p52 = scmp.eq.s32.totalorder %s12, 0
      %p53 = por %p51, %p52
      %p54 = scmp.ne.s32.totalorder %s46, %s48
      %p55 = scmp.eq.s32.totalorder %s17, 1
      %p56 = por %p54, %p55
      %p57 = scmp.ne.s32.totalorder %s48, %s49
      %p58 = scmp.eq.s32.totalorder %s17, 0
      %p59 = por %p57, %p58
      %p60 = scmp.ne.s32.totalorder %s48, %s49
      %p61 = scmp.eq.s32.totalorder %s18, 1
      %p62 = por %p60, %p61
      %p64 = scmp.ne.s32.totalorder %s49, %s63
      %p65 = scmp.eq.s32.totalorder %s18, 0
      %p66 = por %p64, %p65
      %s68 = sadd.s32 %s67, 1
      %p71 = scmp.eq.s32.totalorder %s12, 1
      %p72 = scmp.ne.s32.totalorder %s67, %s69
      %p73 = scmp.eq.s32.totalorder %s12, 0
      %p74 = por %p72, %p73
      %p75 = scmp.ne.s32.totalorder %s67, %s69
      %p76 = scmp.eq.s32.totalorder %s17, 1
      %p77 = por %p75, %p76
      %p78 = scmp.ne.s32.totalorder %s69, %s70
      %p79 = scmp.eq.s32.totalorder %s17, 0
      %p80 = por %p78, %p79
      %p81 = scmp.ne.s32.totalorder %s69, %s70
      %p82 = scmp.eq.s32.totalorder %s18, 1
      %p83 = por %p81, %p82
      %p85 = scmp.ne.s32.totalorder %s70, %s84
      %p86 = scmp.eq.s32.totalorder %s18, 0
      %p87 = por %p85, %p86
      %s88 = ssub.s32 %s12, %s19
      %p89 = scmp.eq.s32.totalorder %s88, 0
      %s91 = sadd.s32 %s90, 1
      %s92 = scalar_select %p89, %s90, %s91
      %p95 = pneg %p89
      %p96 = scmp.eq.s32.totalorder %s12, 1
      %p97 = por %p95, %p96
      %p98 = scmp.ne.s32.totalorder %s90, %s93
      %p99 = scmp.eq.s32.totalorder %s12, 0
      %p100 = por %p98, %p99
      %p101 = scmp.ne.s32.totalorder %s90, %s93
      %p102 = scmp.eq.s32.totalorder %s17, 1
      %p103 = por %p101, %p102
      %p104 = scmp.ne.s32.totalorder %s93, %s94
      %p105 = scmp.eq.s32.totalorder %s17, 0
      %p106 = por %p104, %p105
      %p107 = scmp.ne.s32.totalorder %s93, %s94
      %p108 = scmp.eq.s32.totalorder %s18, 1
      %p109 = por %p107, %p108
      %p111 = scmp.ne.s32.totalorder %s94, %s110
      %p112 = scmp.eq.s32.totalorder %s18, 0
      %p113 = por %p111, %p112
      %p114 = scmp.le.s32.totalorder 1, %s12
      %p115 = scmp.lt.s32.totalorder %s12, 3
      %p116 = pnand %p114, %p115
      %p117 = pneg %p116
      // Predicated region
      $region9: #{up_no_skipconn3d_forward.1} parent=5 // pred_check
        _
      $region10: #{up_no_skipconn3d_forward.1} parent=5 // pred_check_branch
        %119 = sbr.rel (%p116) target = $region12
      $region11: #{up_no_skipconn3d_forward.1} parent=5 // pred_region
        %s120 = ssub.s32 %s12, 1
        // Predicated region
        $region13: #{up_no_skipconn3d_forward.1} parent=11 // pred_check
          %p121 = pneg %p59
        $region14: #{up_no_skipconn3d_forward.1} parent=11 // pred_check_branch
          %123 = sbr.rel (%p121) target = $region16
        $region15: #{up_no_skipconn3d_forward.1} parent=11 // pred_region
          _
        $region16: #{up_no_skipconn3d_forward.1} parent=11 // pred_fallthru
          _
        // Predicated region
        $region17: #{up_no_skipconn3d_forward.1} parent=11 // pred_check
          %p124 = pneg %p80
        $region18: #{up_no_skipconn3d_forward.1} parent=11 // pred_check_branch
          %126 = sbr.rel (%p124) target = $region20
        $region19: #{up_no_skipconn3d_forward.1} parent=11 // pred_region
          _
        $region20: #{up_no_skipconn3d_forward.1} parent=11 // pred_fallthru
          _
      $region12: #{up_no_skipconn3d_forward.1} parent=5 // pred_fallthru
        _
      %p127 = scmp.lt.s32.totalorder %s12, 2
      // Predicated region
      $region21: #{up_no_skipconn3d_forward.1} parent=5 // pred_check
        %p128 = pneg %p127
      $region22: #{up_no_skipconn3d_forward.1} parent=5 // pred_check_branch
        %130 = sbr.rel (%p128) target = $region24
      $region23: #{up_no_skipconn3d_forward.1} parent=5 // pred_region
        // Predicated region
        $region25: #{up_no_skipconn3d_forward.1} parent=23 // pred_check
          %p131 = pneg %p32
        $region26: #{up_no_skipconn3d_forward.1} parent=23 // pred_check_branch
          %133 = sbr.rel (%p131) target = $region28
        $region27: #{up_no_skipconn3d_forward.1} parent=23 // pred_region
          %s134 = sand.u32 %s22, 1
          %s135 = scalar_lea.sflag [#allocation3], %s134
          %s136 = sand.u32 %s22, 1
          %s137 = smul.addr %s136, 1024
          %s138 = scalar_lea.vmem [#allocation2], %s137
          %s139 = smul.u32 128, %s12
          %141 = vsyncadd %s135, 0
          %s142 = smul.addr %s139, 8
          %s143 = scalar_lea.hbm %s0, %s142
          %s144 = sshll.u32 %s143, 4
          %s145 = int_to_ptr.hbm [resolvable:$true] %s144
          %s146 = sshll.u32 %s138, 4
          %s147 = int_to_ptr.vmem [resolvable:$true] %s146
          %152 = dma.hbm_to_vmem [thread:$0]  %s145, 16384, %s147, %s135, 128, 128, 8
        $region28: #{up_no_skipconn3d_forward.1} parent=23 // pred_fallthru
          _
      $region24: #{up_no_skipconn3d_forward.1} parent=5 // pred_fallthru
        _
      %p153 = scmp.le.s32.totalorder 1, %s12
      %p154 = scmp.lt.s32.totalorder %s12, 3
      %p155 = pnand %p153, %p154
      %p156 = pneg %p155
      // Predicated region
      $region29: #{up_no_skipconn3d_forward.1} parent=5 // pred_check
        _
      $region30: #{up_no_skipconn3d_forward.1} parent=5 // pred_check_branch
        %158 = sbr.rel (%p155) target = $region32
      $region31: #{up_no_skipconn3d_forward.1} parent=5 // pred_region
        %s159 = ssub.s32 %s12, 1
        %s160 = sand.u32 %s25, 1
        %s161 = scalar_lea.sflag [#allocation3], %s160
        %s162 = sand.u32 %s25, 1
        %s163 = smul.addr %s162, 1024
        %s164 = scalar_lea.vmem [#allocation2], %s163
        // Predicated region
        $region33: #{up_no_skipconn3d_forward.1} parent=31 // pred_check
          %p165 = pneg %p38
        $region34: #{up_no_skipconn3d_forward.1} parent=31 // pred_check_branch
          %167 = sbr.rel (%p165) target = $region36
        $region35: #{up_no_skipconn3d_forward.1} parent=31 // pred_region
          %169 = dma.done %s161, 16384
        $region36: #{up_no_skipconn3d_forward.1} parent=31 // pred_fallthru
          _
        %s170 = sand.u32 %s25, 1
        %s171 = scalar_lea.sflag [#allocation3], %s170
        %s172 = sand.u32 %s25, 1
        %s173 = smul.addr %s172, 1024
        %s174 = scalar_lea.vmem [#allocation2], %s173
        %p175 = pneg %p38
        %p176 = pneg %p35
        %p177 = pneg %p59
        %p178 = pneg %p56
        %p179 = pneg %p80
        %p180 = pneg %p77
        %p181 = pneg %p106
        %p182 = pneg %p103
        %s183 = smul.u32 64, %s17
        %p184 = scmp.lt.s32.totalorder %s183, 127
        %s185 = scalar_select %p184, %s183, 127
        %s186 = smul.addr %s185, 4
        %s187 = smul.addr %s186, 8
        %s188 = scalar_lea.vmem %s3, %s187
        %s189 = smul.u32 128, %s17
        %s190 = smul.u32 64, %s17
        %p191 = scmp.lt.s32.totalorder %s190, 127
        %s192 = scalar_select %p191, %s190, 127
        %s193 = smul.addr %s192, 4
        %s194 = smul.addr %s193, 8
        %s195 = scalar_lea.vmem %s3, %s194
        %s196 = smul.u32 64, %s17
        %v197 = vld [vmem:[%s164] sm:$0xff]
        %v198 = vld [vmem:[%s164 + $0x8] sm:$0xff]
        %v199 = vld [vmem:[%s164 + $0x10] sm:$0xff]
        %v200 = vld [vmem:[%s164 + $0x18] sm:$0xff]
        %v201 = vld [vmem:[%s164 + $0x20] sm:$0xff]
        %v202 = vld [vmem:[%s164 + $0x28] sm:$0xff]
        %v203 = vld [vmem:[%s164 + $0x30] sm:$0xff]
        %v204 = vld [vmem:[%s164 + $0x38] sm:$0xff]
        %v205 = vld [vmem:[%s164 + $0x40] sm:$0xff]
        %v206 = vld [vmem:[%s164 + $0x48] sm:$0xff]
        %v207 = vld [vmem:[%s164 + $0x50] sm:$0xff]
        %v208 = vld [vmem:[%s164 + $0x58] sm:$0xff]
        %v209 = vld [vmem:[%s164 + $0x60] sm:$0xff]
        %v210 = vld [vmem:[%s164 + $0x68] sm:$0xff]
        %v211 = vld [vmem:[%s164 + $0x70] sm:$0xff]
        %v212 = vld [vmem:[%s164 + $0x78] sm:$0xff]
        %v213 = vld [vmem:[%s164 + $0x80] sm:$0xff]
        %v214 = vld [vmem:[%s164 + $0x88] sm:$0xff]
        %v215 = vld [vmem:[%s164 + $0x90] sm:$0xff]
        %v216 = vld [vmem:[%s164 + $0x98] sm:$0xff]
        %v217 = vld [vmem:[%s164 + $0xa0] sm:$0xff]
        %v218 = vld [vmem:[%s164 + $0xa8] sm:$0xff]
        %v219 = vld [vmem:[%s164 + $0xb0] sm:$0xff]
        %v220 = vld [vmem:[%s164 + $0xb8] sm:$0xff]
        %v221 = vld [vmem:[%s164 + $0xc0] sm:$0xff]
        %v222 = vld [vmem:[%s164 + $0xc8] sm:$0xff]
        %v223 = vld [vmem:[%s164 + $0xd0] sm:$0xff]
        %v224 = vld [vmem:[%s164 + $0xd8] sm:$0xff]
        %v225 = vld [vmem:[%s164 + $0xe0] sm:$0xff]
        %v226 = vld [vmem:[%s164 + $0xe8] sm:$0xff]
        %v227 = vld [vmem:[%s164 + $0xf0] sm:$0xff]
        %v228 = vld [vmem:[%s164 + $0xf8] sm:$0xff]
        %v229 = vld [vmem:[%s164 + $0x100] sm:$0xff]
        %v230 = vld [vmem:[%s164 + $0x108] sm:$0xff]
        %v231 = vld [vmem:[%s164 + $0x110] sm:$0xff]
        %v232 = vld [vmem:[%s164 + $0x118] sm:$0xff]
        %v233 = vld [vmem:[%s164 + $0x120] sm:$0xff]
        %v234 = vld [vmem:[%s164 + $0x128] sm:$0xff]
        %v235 = vld [vmem:[%s164 + $0x130] sm:$0xff]
        %v236 = vld [vmem:[%s164 + $0x138] sm:$0xff]
        %v237 = vld [vmem:[%s164 + $0x140] sm:$0xff]
        %v238 = vld [vmem:[%s164 + $0x148] sm:$0xff]
        %v239 = vld [vmem:[%s164 + $0x150] sm:$0xff]
        %v240 = vld [vmem:[%s164 + $0x158] sm:$0xff]
        %v241 = vld [vmem:[%s164 + $0x160] sm:$0xff]
        %v242 = vld [vmem:[%s164 + $0x168] sm:$0xff]
        %v243 = vld [vmem:[%s164 + $0x170] sm:$0xff]
        %v244 = vld [vmem:[%s164 + $0x178] sm:$0xff]
        %v245 = vld [vmem:[%s164 + $0x180] sm:$0xff]
        %v246 = vld [vmem:[%s164 + $0x188] sm:$0xff]
        %v247 = vld [vmem:[%s164 + $0x190] sm:$0xff]
        %v248 = vld [vmem:[%s164 + $0x198] sm:$0xff]
        %v249 = vld [vmem:[%s164 + $0x1a0] sm:$0xff]
        %v250 = vld [vmem:[%s164 + $0x1a8] sm:$0xff]
        %v251 = vld [vmem:[%s164 + $0x1b0] sm:$0xff]
        %v252 = vld [vmem:[%s164 + $0x1b8] sm:$0xff]
        %v253 = vld [vmem:[%s164 + $0x1c0] sm:$0xff]
        %v254 = vld [vmem:[%s164 + $0x1c8] sm:$0xff]
        %v255 = vld [vmem:[%s164 + $0x1d0] sm:$0xff]
        %v256 = vld [vmem:[%s164 + $0x1d8] sm:$0xff]
        %v257 = vld [vmem:[%s164 + $0x1e0] sm:$0xff]
        %v258 = vld [vmem:[%s164 + $0x1e8] sm:$0xff]
        %v259 = vld [vmem:[%s164 + $0x1f0] sm:$0xff]
        %v260 = vld [vmem:[%s164 + $0x1f8] sm:$0xff]
        %v261 = vld [vmem:[%s164 + $0x200] sm:$0xff]
        %v262 = vld [vmem:[%s164 + $0x208] sm:$0xff]
        %v263 = vld [vmem:[%s164 + $0x210] sm:$0xff]
        %v264 = vld [vmem:[%s164 + $0x218] sm:$0xff]
        %v265 = vld [vmem:[%s164 + $0x220] sm:$0xff]
        %v266 = vld [vmem:[%s164 + $0x228] sm:$0xff]
        %v267 = vld [vmem:[%s164 + $0x230] sm:$0xff]
        %v268 = vld [vmem:[%s164 + $0x238] sm:$0xff]
        %v269 = vld [vmem:[%s164 + $0x240] sm:$0xff]
        %v270 = vld [vmem:[%s164 + $0x248] sm:$0xff]
        %v271 = vld [vmem:[%s164 + $0x250] sm:$0xff]
        %v272 = vld [vmem:[%s164 + $0x258] sm:$0xff]
        %v273 = vld [vmem:[%s164 + $0x260] sm:$0xff]
        %v274 = vld [vmem:[%s164 + $0x268] sm:$0xff]
        %v275 = vld [vmem:[%s164 + $0x270] sm:$0xff]
        %v276 = vld [vmem:[%s164 + $0x278] sm:$0xff]
        %v277 = vld [vmem:[%s164 + $0x280] sm:$0xff]
        %v278 = vld [vmem:[%s164 + $0x288] sm:$0xff]
        %v279 = vld [vmem:[%s164 + $0x290] sm:$0xff]
        %v280 = vld [vmem:[%s164 + $0x298] sm:$0xff]
        %v281 = vld [vmem:[%s164 + $0x2a0] sm:$0xff]
        %v282 = vld [vmem:[%s164 + $0x2a8] sm:$0xff]
        %v283 = vld [vmem:[%s164 + $0x2b0] sm:$0xff]
        %v284 = vld [vmem:[%s164 + $0x2b8] sm:$0xff]
        %v285 = vld [vmem:[%s164 + $0x2c0] sm:$0xff]
        %v286 = vld [vmem:[%s164 + $0x2c8] sm:$0xff]
        %v287 = vld [vmem:[%s164 + $0x2d0] sm:$0xff]
        %v288 = vld [vmem:[%s164 + $0x2d8] sm:$0xff]
        %v289 = vld [vmem:[%s164 + $0x2e0] sm:$0xff]
        %v290 = vld [vmem:[%s164 + $0x2e8] sm:$0xff]
        %v291 = vld [vmem:[%s164 + $0x2f0] sm:$0xff]
        %v292 = vld [vmem:[%s164 + $0x2f8] sm:$0xff]
        %v293 = vld [vmem:[%s164 + $0x300] sm:$0xff]
        %v294 = vld [vmem:[%s164 + $0x308] sm:$0xff]
        %v295 = vld [vmem:[%s164 + $0x310] sm:$0xff]
        %v296 = vld [vmem:[%s164 + $0x318] sm:$0xff]
        %v297 = vld [vmem:[%s164 + $0x320] sm:$0xff]
        %v298 = vld [vmem:[%s164 + $0x328] sm:$0xff]
        %v299 = vld [vmem:[%s164 + $0x330] sm:$0xff]
        %v300 = vld [vmem:[%s164 + $0x338] sm:$0xff]
        %v301 = vld [vmem:[%s164 + $0x340] sm:$0xff]
        %v302 = vld [vmem:[%s164 + $0x348] sm:$0xff]
        %v303 = vld [vmem:[%s164 + $0x350] sm:$0xff]
        %v304 = vld [vmem:[%s164 + $0x358] sm:$0xff]
        %v305 = vld [vmem:[%s164 + $0x360] sm:$0xff]
        %v306 = vld [vmem:[%s164 + $0x368] sm:$0xff]
        %v307 = vld [vmem:[%s164 + $0x370] sm:$0xff]
        %v308 = vld [vmem:[%s164 + $0x378] sm:$0xff]
        %v309 = vld [vmem:[%s164 + $0x380] sm:$0xff]
        %v310 = vld [vmem:[%s164 + $0x388] sm:$0xff]
        %v311 = vld [vmem:[%s164 + $0x390] sm:$0xff]
        %v312 = vld [vmem:[%s164 + $0x398] sm:$0xff]
        %v313 = vld [vmem:[%s164 + $0x3a0] sm:$0xff]
        %v314 = vld [vmem:[%s164 + $0x3a8] sm:$0xff]
        %v315 = vld [vmem:[%s164 + $0x3b0] sm:$0xff]
        %v316 = vld [vmem:[%s164 + $0x3b8] sm:$0xff]
        %v317 = vld [vmem:[%s164 + $0x3c0] sm:$0xff]
        %v318 = vld [vmem:[%s164 + $0x3c8] sm:$0xff]
        %v319 = vld [vmem:[%s164 + $0x3d0] sm:$0xff]
        %v320 = vld [vmem:[%s164 + $0x3d8] sm:$0xff]
        %v321 = vld [vmem:[%s164 + $0x3e0] sm:$0xff]
        %v322 = vld [vmem:[%s164 + $0x3e8] sm:$0xff]
        %v323 = vld [vmem:[%s164 + $0x3f0] sm:$0xff]
        %v324 = vld [vmem:[%s164 + $0x3f8] sm:$0xff]
        %v325 = vld [vmem:[%s1] sm:$0xff]
        %v326 = vld [vmem:[%s1 + $0x8] sm:$0xff]
        %v327 = vld [vmem:[%s1 + $0x10] sm:$0xff]
        %v328 = vld [vmem:[%s1 + $0x18] sm:$0xff]
        %v329 = vld [vmem:[%s1 + $0x20] sm:$0xff]
        %v330 = vld [vmem:[%s1 + $0x28] sm:$0xff]
        %v331 = vld [vmem:[%s1 + $0x30] sm:$0xff]
        %v332 = vld [vmem:[%s1 + $0x38] sm:$0xff]
        %v333 = vld [vmem:[%s2] sm:$0x1]
        %v335 = vperm.slane %v333, 0
        %vm337 = vcmask 523264
        %v339 = vsel %vm337, %v197, 0
        %v342 = vsel %vm337, %v198, 0
        %v345 = vsel %vm337, %v199, 0
        %v348 = vsel %vm337, %v200, 0
        %v351 = vsel %vm337, %v201, 0
        %v354 = vsel %vm337, %v202, 0
        %v357 = vsel %vm337, %v203, 0
        %v360 = vsel %vm337, %v204, 0
        %v363 = vsel %vm337, %v205, 0
        %v366 = vsel %vm337, %v206, 0
        %v369 = vsel %vm337, %v207, 0
        %v372 = vsel %vm337, %v208, 0
        %v375 = vsel %vm337, %v209, 0
        %v378 = vsel %vm337, %v210, 0
        %v381 = vsel %vm337, %v211, 0
        %v384 = vsel %vm337, %v212, 0
        %v387 = vsel %vm337, %v213, 0
        %v390 = vsel %vm337, %v214, 0
        %v393 = vsel %vm337, %v215, 0
        %v396 = vsel %vm337, %v216, 0
        %v399 = vsel %vm337, %v217, 0
        %v402 = vsel %vm337, %v218, 0
        %v405 = vsel %vm337, %v219, 0
        %v408 = vsel %vm337, %v220, 0
        %v411 = vsel %vm337, %v221, 0
        %v414 = vsel %vm337, %v222, 0
        %v417 = vsel %vm337, %v223, 0
        %v420 = vsel %vm337, %v224, 0
        %v423 = vsel %vm337, %v225, 0
        %v426 = vsel %vm337, %v226, 0
        %v429 = vsel %vm337, %v227, 0
        %v432 = vsel %vm337, %v228, 0
        %v435 = vsel %vm337, %v229, 0
        %v438 = vsel %vm337, %v230, 0
        %v441 = vsel %vm337, %v231, 0
        %v444 = vsel %vm337, %v232, 0
        %v447 = vsel %vm337, %v233, 0
        %v450 = vsel %vm337, %v234, 0
        %v453 = vsel %vm337, %v235, 0
        %v456 = vsel %vm337, %v236, 0
        %v459 = vsel %vm337, %v237, 0
        %v462 = vsel %vm337, %v238, 0
        %v465 = vsel %vm337, %v239, 0
        %v468 = vsel %vm337, %v240, 0
        %v471 = vsel %vm337, %v241, 0
        %v474 = vsel %vm337, %v242, 0
        %v477 = vsel %vm337, %v243, 0
        %v480 = vsel %vm337, %v244, 0
        %v483 = vsel %vm337, %v245, 0
        %v486 = vsel %vm337, %v246, 0
        %v489 = vsel %vm337, %v247, 0
        %v492 = vsel %vm337, %v248, 0
        %v495 = vsel %vm337, %v249, 0
        %v498 = vsel %vm337, %v250, 0
        %v501 = vsel %vm337, %v251, 0
        %v504 = vsel %vm337, %v252, 0
        %v507 = vsel %vm337, %v253, 0
        %v510 = vsel %vm337, %v254, 0
        %v513 = vsel %vm337, %v255, 0
        %v516 = vsel %vm337, %v256, 0
        %v519 = vsel %vm337, %v257, 0
        %v522 = vsel %vm337, %v258, 0
        %v525 = vsel %vm337, %v259, 0
        %v528 = vsel %vm337, %v260, 0
        %v531 = vsel %vm337, %v261, 0
        %v534 = vsel %vm337, %v262, 0
        %v537 = vsel %vm337, %v263, 0
        %v540 = vsel %vm337, %v264, 0
        %v543 = vsel %vm337, %v265, 0
        %v546 = vsel %vm337, %v266, 0
        %v549 = vsel %vm337, %v267, 0
        %v552 = vsel %vm337, %v268, 0
        %v555 = vsel %vm337, %v269, 0
        %v558 = vsel %vm337, %v270, 0
        %v561 = vsel %vm337, %v271, 0
        %v564 = vsel %vm337, %v272, 0
        %v567 = vsel %vm337, %v273, 0
        %v570 = vsel %vm337, %v274, 0
        %v573 = vsel %vm337, %v275, 0
        %v576 = vsel %vm337, %v276, 0
        %v579 = vsel %vm337, %v277, 0
        %v582 = vsel %vm337, %v278, 0
        %v585 = vsel %vm337, %v279, 0
        %v588 = vsel %vm337, %v280, 0
        %v591 = vsel %vm337, %v281, 0
        %v594 = vsel %vm337, %v282, 0
        %v597 = vsel %vm337, %v283, 0
        %v600 = vsel %vm337, %v284, 0
        %v603 = vsel %vm337, %v285, 0
        %v606 = vsel %vm337, %v286, 0
        %v609 = vsel %vm337, %v287, 0
        %v612 = vsel %vm337, %v288, 0
        %v615 = vsel %vm337, %v289, 0
        %v618 = vsel %vm337, %v290, 0
        %v621 = vsel %vm337, %v291, 0
        %v624 = vsel %vm337, %v292, 0
        %v627 = vsel %vm337, %v293, 0
        %v630 = vsel %vm337, %v294, 0
        %v633 = vsel %vm337, %v295, 0
        %v636 = vsel %vm337, %v296, 0
        %v639 = vsel %vm337, %v297, 0
        %v642 = vsel %vm337, %v298, 0
        %v645 = vsel %vm337, %v299, 0
        %v648 = vsel %vm337, %v300, 0
        %v651 = vsel %vm337, %v301, 0
        %v654 = vsel %vm337, %v302, 0
        %v657 = vsel %vm337, %v303, 0
        %v660 = vsel %vm337, %v304, 0
        %v663 = vsel %vm337, %v305, 0
        %v666 = vsel %vm337, %v306, 0
        %v669 = vsel %vm337, %v307, 0
        %v672 = vsel %vm337, %v308, 0
        %v675 = vsel %vm337, %v309, 0
        %v678 = vsel %vm337, %v310, 0
        %v681 = vsel %vm337, %v311, 0
        %v684 = vsel %vm337, %v312, 0
        %v687 = vsel %vm337, %v313, 0
        %v690 = vsel %vm337, %v314, 0
        %v693 = vsel %vm337, %v315, 0
        %v696 = vsel %vm337, %v316, 0
        %v699 = vsel %vm337, %v317, 0
        %v702 = vsel %vm337, %v318, 0
        %v705 = vsel %vm337, %v319, 0
        %v708 = vsel %vm337, %v320, 0
        %v711 = vsel %vm337, %v321, 0
        %v714 = vsel %vm337, %v322, 0
        %v717 = vsel %vm337, %v323, 0
        %v720 = vsel %vm337, %v324, 0
        %722 = vmatpush.msra.mxu0 0.0
        %723 = vmatpush.msra.mxu0 0.0
        %724 = vmatpush.msra.mxu0 0.0
        %725 = vmatpush.msra.mxu0 0.0
        %726 = vmatpush.msra.mxu0 0.0
        %727 = vmatpush.msra.mxu0 0.0
        %728 = vmatpush.msra.mxu0 0.0
        %729 = vmatpush.msra.mxu0 0.0
        %730 = vmatpush.msra.mxu0 %v332
        %731 = vmatpush.msra.mxu0 %v331
        %732 = vmatpush.msra.mxu0 %v330
        %733 = vmatpush.msra.mxu0 %v329
        %734 = vmatpush.msra.mxu0 %v328
        %735 = vmatpush.msra.mxu0 %v327
        %736 = vmatpush.msra.mxu0 %v326
        %737 = vmatpush.msra.mxu0 %v325
        %738 = vmatmul.f32.gmra.mxu0 %v339
        %v739 = vpop.f32.mrf.mxu0
        %v740 = vadd.f32 %v335, %v739
        %741 = vmatmul.f32.gmra.mxu0 %v342
        %v742 = vpop.f32.mrf.mxu0
        %v743 = vadd.f32 %v335, %v742
        %744 = vmatmul.f32.gmra.mxu0 %v345
        %v745 = vpop.f32.mrf.mxu0
        %v746 = vadd.f32 %v335, %v745
        %747 = vmatmul.f32.gmra.mxu0 %v348
        %v748 = vpop.f32.mrf.mxu0
        %v749 = vadd.f32 %v335, %v748
        %750 = vmatmul.f32.gmra.mxu0 %v351
        %v751 = vpop.f32.mrf.mxu0
        %v752 = vadd.f32 %v335, %v751
        %753 = vmatmul.f32.gmra.mxu0 %v354
        %v754 = vpop.f32.mrf.mxu0
        %v755 = vadd.f32 %v335, %v754
        %756 = vmatmul.f32.gmra.mxu0 %v357
        %v757 = vpop.f32.mrf.mxu0
        %v758 = vadd.f32 %v335, %v757
        %759 = vmatmul.f32.gmra.mxu0 %v360
        %v760 = vpop.f32.mrf.mxu0
        %v761 = vadd.f32 %v335, %v760
        %762 = vmatmul.f32.gmra.mxu0 %v363
        %v763 = vpop.f32.mrf.mxu0
        %v764 = vadd.f32 %v335, %v763
        %765 = vmatmul.f32.gmra.mxu0 %v366
        %v766 = vpop.f32.mrf.mxu0
        %v767 = vadd.f32 %v335, %v766
        %768 = vmatmul.f32.gmra.mxu0 %v369
        %v769 = vpop.f32.mrf.mxu0
        %v770 = vadd.f32 %v335, %v769
        %771 = vmatmul.f32.gmra.mxu0 %v372
        %v772 = vpop.f32.mrf.mxu0
        %v773 = vadd.f32 %v335, %v772
        %774 = vmatmul.f32.gmra.mxu0 %v375
        %v775 = vpop.f32.mrf.mxu0
        %v776 = vadd.f32 %v335, %v775
        %777 = vmatmul.f32.gmra.mxu0 %v378
        %v778 = vpop.f32.mrf.mxu0
        %v779 = vadd.f32 %v335, %v778
        %780 = vmatmul.f32.gmra.mxu0 %v381
        %v781 = vpop.f32.mrf.mxu0
        %v782 = vadd.f32 %v335, %v781
        %783 = vmatmul.f32.gmra.mxu0 %v384
        %v784 = vpop.f32.mrf.mxu0
        %v785 = vadd.f32 %v335, %v784
        %786 = vmatmul.f32.gmra.mxu0 %v387
        %v787 = vpop.f32.mrf.mxu0
        %v788 = vadd.f32 %v335, %v787
        %789 = vmatmul.f32.gmra.mxu0 %v390
        %v790 = vpop.f32.mrf.mxu0
        %v791 = vadd.f32 %v335, %v790
        %792 = vmatmul.f32.gmra.mxu0 %v393
        %v793 = vpop.f32.mrf.mxu0
        %v794 = vadd.f32 %v335, %v793
        %795 = vmatmul.f32.gmra.mxu0 %v396
        %v796 = vpop.f32.mrf.mxu0
        %v797 = vadd.f32 %v335, %v796
        %798 = vmatmul.f32.gmra.mxu0 %v399
        %v799 = vpop.f32.mrf.mxu0
        %v800 = vadd.f32 %v335, %v799
        %801 = vmatmul.f32.gmra.mxu0 %v402
        %v802 = vpop.f32.mrf.mxu0
        %v803 = vadd.f32 %v335, %v802
        %804 = vmatmul.f32.gmra.mxu0 %v405
        %v805 = vpop.f32.mrf.mxu0
        %v806 = vadd.f32 %v335, %v805
        %807 = vmatmul.f32.gmra.mxu0 %v408
        %v808 = vpop.f32.mrf.mxu0
        %v809 = vadd.f32 %v335, %v808
        %810 = vmatmul.f32.gmra.mxu0 %v411
        %v811 = vpop.f32.mrf.mxu0
        %v812 = vadd.f32 %v335, %v811
        %813 = vmatmul.f32.gmra.mxu0 %v414
        %v814 = vpop.f32.mrf.mxu0
        %v815 = vadd.f32 %v335, %v814
        %816 = vmatmul.f32.gmra.mxu0 %v417
        %v817 = vpop.f32.mrf.mxu0
        %v818 = vadd.f32 %v335, %v817
        %819 = vmatmul.f32.gmra.mxu0 %v420
        %v820 = vpop.f32.mrf.mxu0
        %v821 = vadd.f32 %v335, %v820
        %822 = vmatmul.f32.gmra.mxu0 %v423
        %v823 = vpop.f32.mrf.mxu0
        %v824 = vadd.f32 %v335, %v823
        %825 = vmatmul.f32.gmra.mxu0 %v426
        %v826 = vpop.f32.mrf.mxu0
        %v827 = vadd.f32 %v335, %v826
        %828 = vmatmul.f32.gmra.mxu0 %v429
        %v829 = vpop.f32.mrf.mxu0
        %v830 = vadd.f32 %v335, %v829
        %831 = vmatmul.f32.gmra.mxu0 %v432
        %v832 = vpop.f32.mrf.mxu0
        %v833 = vadd.f32 %v335, %v832
        %834 = vmatmul.f32.gmra.mxu0 %v435
        %v835 = vpop.f32.mrf.mxu0
        %v836 = vadd.f32 %v335, %v835
        %837 = vmatmul.f32.gmra.mxu0 %v438
        %v838 = vpop.f32.mrf.mxu0
        %v839 = vadd.f32 %v335, %v838
        %840 = vmatmul.f32.gmra.mxu0 %v441
        %v841 = vpop.f32.mrf.mxu0
        %v842 = vadd.f32 %v335, %v841
        %843 = vmatmul.f32.gmra.mxu0 %v444
        %v844 = vpop.f32.mrf.mxu0
        %v845 = vadd.f32 %v335, %v844
        %846 = vmatmul.f32.gmra.mxu0 %v447
        %v847 = vpop.f32.mrf.mxu0
        %v848 = vadd.f32 %v335, %v847
        %849 = vmatmul.f32.gmra.mxu0 %v450
        %v850 = vpop.f32.mrf.mxu0
        %v851 = vadd.f32 %v335, %v850
        %852 = vmatmul.f32.gmra.mxu0 %v453
        %v853 = vpop.f32.mrf.mxu0
        %v854 = vadd.f32 %v335, %v853
        %855 = vmatmul.f32.gmra.mxu0 %v456
        %v856 = vpop.f32.mrf.mxu0
        %v857 = vadd.f32 %v335, %v856
        %858 = vmatmul.f32.gmra.mxu0 %v459
        %v859 = vpop.f32.mrf.mxu0
        %v860 = vadd.f32 %v335, %v859
        %861 = vmatmul.f32.gmra.mxu0 %v462
        %v862 = vpop.f32.mrf.mxu0
        %v863 = vadd.f32 %v335, %v862
        %864 = vmatmul.f32.gmra.mxu0 %v465
        %v865 = vpop.f32.mrf.mxu0
        %v866 = vadd.f32 %v335, %v865
        %867 = vmatmul.f32.gmra.mxu0 %v468
        %v868 = vpop.f32.mrf.mxu0
        %v869 = vadd.f32 %v335, %v868
        %870 = vmatmul.f32.gmra.mxu0 %v471
        %v871 = vpop.f32.mrf.mxu0
        %v872 = vadd.f32 %v335, %v871
        %873 = vmatmul.f32.gmra.mxu0 %v474
        %v874 = vpop.f32.mrf.mxu0
        %v875 = vadd.f32 %v335, %v874
        %876 = vmatmul.f32.gmra.mxu0 %v477
        %v877 = vpop.f32.mrf.mxu0
        %v878 = vadd.f32 %v335, %v877
        %879 = vmatmul.f32.gmra.mxu0 %v480
        %v880 = vpop.f32.mrf.mxu0
        %v881 = vadd.f32 %v335, %v880
        %882 = vmatmul.f32.gmra.mxu0 %v483
        %v883 = vpop.f32.mrf.mxu0
        %v884 = vadd.f32 %v335, %v883
        %885 = vmatmul.f32.gmra.mxu0 %v486
        %v886 = vpop.f32.mrf.mxu0
        %v887 = vadd.f32 %v335, %v886
        %888 = vmatmul.f32.gmra.mxu0 %v489
        %v889 = vpop.f32.mrf.mxu0
        %v890 = vadd.f32 %v335, %v889
        %891 = vmatmul.f32.gmra.mxu0 %v492
        %v892 = vpop.f32.mrf.mxu0
        %v893 = vadd.f32 %v335, %v892
        %894 = vmatmul.f32.gmra.mxu0 %v495
        %v895 = vpop.f32.mrf.mxu0
        %v896 = vadd.f32 %v335, %v895
        %897 = vmatmul.f32.gmra.mxu0 %v498
        %v898 = vpop.f32.mrf.mxu0
        %v899 = vadd.f32 %v335, %v898
        %900 = vmatmul.f32.gmra.mxu0 %v501
        %v901 = vpop.f32.mrf.mxu0
        %v902 = vadd.f32 %v335, %v901
        %903 = vmatmul.f32.gmra.mxu0 %v504
        %v904 = vpop.f32.mrf.mxu0
        %v905 = vadd.f32 %v335, %v904
        %906 = vmatmul.f32.gmra.mxu0 %v507
        %v907 = vpop.f32.mrf.mxu0
        %v908 = vadd.f32 %v335, %v907
        %909 = vmatmul.f32.gmra.mxu0 %v510
        %v910 = vpop.f32.mrf.mxu0
        %v911 = vadd.f32 %v335, %v910
        %912 = vmatmul.f32.gmra.mxu0 %v513
        %v913 = vpop.f32.mrf.mxu0
        %v914 = vadd.f32 %v335, %v913
        %915 = vmatmul.f32.gmra.mxu0 %v516
        %v916 = vpop.f32.mrf.mxu0
        %v917 = vadd.f32 %v335, %v916
        %918 = vmatmul.f32.gmra.mxu0 %v519
        %v919 = vpop.f32.mrf.mxu0
        %v920 = vadd.f32 %v335, %v919
        %921 = vmatmul.f32.gmra.mxu0 %v522
        %v922 = vpop.f32.mrf.mxu0
        %v923 = vadd.f32 %v335, %v922
        %924 = vmatmul.f32.gmra.mxu0 %v525
        %v925 = vpop.f32.mrf.mxu0
        %v926 = vadd.f32 %v335, %v925
        %927 = vmatmul.f32.gmra.mxu0 %v528
        %v928 = vpop.f32.mrf.mxu0
        %v929 = vadd.f32 %v335, %v928
        %930 = vmatmul.f32.gmra.mxu0 %v531
        %v931 = vpop.f32.mrf.mxu0
        %v932 = vadd.f32 %v335, %v931
        %933 = vmatmul.f32.gmra.mxu0 %v534
        %v934 = vpop.f32.mrf.mxu0
        %v935 = vadd.f32 %v335, %v934
        %936 = vmatmul.f32.gmra.mxu0 %v537
        %v937 = vpop.f32.mrf.mxu0
        %v938 = vadd.f32 %v335, %v937
        %939 = vmatmul.f32.gmra.mxu0 %v540
        %v940 = vpop.f32.mrf.mxu0
        %v941 = vadd.f32 %v335, %v940
        %942 = vmatmul.f32.gmra.mxu0 %v543
        %v943 = vpop.f32.mrf.mxu0
        %v944 = vadd.f32 %v335, %v943
        %945 = vmatmul.f32.gmra.mxu0 %v546
        %v946 = vpop.f32.mrf.mxu0
        %v947 = vadd.f32 %v335, %v946
        %948 = vmatmul.f32.gmra.mxu0 %v549
        %v949 = vpop.f32.mrf.mxu0
        %v950 = vadd.f32 %v335, %v949
        %951 = vmatmul.f32.gmra.mxu0 %v552
        %v952 = vpop.f32.mrf.mxu0
        %v953 = vadd.f32 %v335, %v952
        %954 = vmatmul.f32.gmra.mxu0 %v555
        %v955 = vpop.f32.mrf.mxu0
        %v956 = vadd.f32 %v335, %v955
        %957 = vmatmul.f32.gmra.mxu0 %v558
        %v958 = vpop.f32.mrf.mxu0
        %v959 = vadd.f32 %v335, %v958
        %960 = vmatmul.f32.gmra.mxu0 %v561
        %v961 = vpop.f32.mrf.mxu0
        %v962 = vadd.f32 %v335, %v961
        %963 = vmatmul.f32.gmra.mxu0 %v564
        %v964 = vpop.f32.mrf.mxu0
        %v965 = vadd.f32 %v335, %v964
        %966 = vmatmul.f32.gmra.mxu0 %v567
        %v967 = vpop.f32.mrf.mxu0
        %v968 = vadd.f32 %v335, %v967
        %969 = vmatmul.f32.gmra.mxu0 %v570
        %v970 = vpop.f32.mrf.mxu0
        %v971 = vadd.f32 %v335, %v970
        %972 = vmatmul.f32.gmra.mxu0 %v573
        %v973 = vpop.f32.mrf.mxu0
        %v974 = vadd.f32 %v335, %v973
        %975 = vmatmul.f32.gmra.mxu0 %v576
        %v976 = vpop.f32.mrf.mxu0
        %v977 = vadd.f32 %v335, %v976
        %978 = vmatmul.f32.gmra.mxu0 %v579
        %v979 = vpop.f32.mrf.mxu0
        %v980 = vadd.f32 %v335, %v979
        %981 = vmatmul.f32.gmra.mxu0 %v582
        %v982 = vpop.f32.mrf.mxu0
        %v983 = vadd.f32 %v335, %v982
        %984 = vmatmul.f32.gmra.mxu0 %v585
        %v985 = vpop.f32.mrf.mxu0
        %v986 = vadd.f32 %v335, %v985
        %987 = vmatmul.f32.gmra.mxu0 %v588
        %v988 = vpop.f32.mrf.mxu0
        %v989 = vadd.f32 %v335, %v988
        %990 = vmatmul.f32.gmra.mxu0 %v591
        %v991 = vpop.f32.mrf.mxu0
        %v992 = vadd.f32 %v335, %v991
        %993 = vmatmul.f32.gmra.mxu0 %v594
        %v994 = vpop.f32.mrf.mxu0
        %v995 = vadd.f32 %v335, %v994
        %996 = vmatmul.f32.gmra.mxu0 %v597
        %v997 = vpop.f32.mrf.mxu0
        %v998 = vadd.f32 %v335, %v997
        %999 = vmatmul.f32.gmra.mxu0 %v600
        %v1000 = vpop.f32.mrf.mxu0
        %v1001 = vadd.f32 %v335, %v1000
        %1002 = vmatmul.f32.gmra.mxu0 %v603
        %v1003 = vpop.f32.mrf.mxu0
        %v1004 = vadd.f32 %v335, %v1003
        %1005 = vmatmul.f32.gmra.mxu0 %v606
        %v1006 = vpop.f32.mrf.mxu0
        %v1007 = vadd.f32 %v335, %v1006
        %1008 = vmatmul.f32.gmra.mxu0 %v609
        %v1009 = vpop.f32.mrf.mxu0
        %v1010 = vadd.f32 %v335, %v1009
        %1011 = vmatmul.f32.gmra.mxu0 %v612
        %v1012 = vpop.f32.mrf.mxu0
        %v1013 = vadd.f32 %v335, %v1012
        %1014 = vmatmul.f32.gmra.mxu0 %v615
        %v1015 = vpop.f32.mrf.mxu0
        %v1016 = vadd.f32 %v335, %v1015
        %1017 = vmatmul.f32.gmra.mxu0 %v618
        %v1018 = vpop.f32.mrf.mxu0
        %v1019 = vadd.f32 %v335, %v1018
        %1020 = vmatmul.f32.gmra.mxu0 %v621
        %v1021 = vpop.f32.mrf.mxu0
        %v1022 = vadd.f32 %v335, %v1021
        %1023 = vmatmul.f32.gmra.mxu0 %v624
        %v1024 = vpop.f32.mrf.mxu0
        %v1025 = vadd.f32 %v335, %v1024
        %1026 = vmatmul.f32.gmra.mxu0 %v627
        %v1027 = vpop.f32.mrf.mxu0
        %v1028 = vadd.f32 %v335, %v1027
        %1029 = vmatmul.f32.gmra.mxu0 %v630
        %v1030 = vpop.f32.mrf.mxu0
        %v1031 = vadd.f32 %v335, %v1030
        %1032 = vmatmul.f32.gmra.mxu0 %v633
        %v1033 = vpop.f32.mrf.mxu0
        %v1034 = vadd.f32 %v335, %v1033
        %1035 = vmatmul.f32.gmra.mxu0 %v636
        %v1036 = vpop.f32.mrf.mxu0
        %v1037 = vadd.f32 %v335, %v1036
        %1038 = vmatmul.f32.gmra.mxu0 %v639
        %v1039 = vpop.f32.mrf.mxu0
        %v1040 = vadd.f32 %v335, %v1039
        %1041 = vmatmul.f32.gmra.mxu0 %v642
        %v1042 = vpop.f32.mrf.mxu0
        %v1043 = vadd.f32 %v335, %v1042
        %1044 = vmatmul.f32.gmra.mxu0 %v645
        %v1045 = vpop.f32.mrf.mxu0
        %v1046 = vadd.f32 %v335, %v1045
        %1047 = vmatmul.f32.gmra.mxu0 %v648
        %v1048 = vpop.f32.mrf.mxu0
        %v1049 = vadd.f32 %v335, %v1048
        %1050 = vmatmul.f32.gmra.mxu0 %v651
        %v1051 = vpop.f32.mrf.mxu0
        %v1052 = vadd.f32 %v335, %v1051
        %1053 = vmatmul.f32.gmra.mxu0 %v654
        %v1054 = vpop.f32.mrf.mxu0
        %v1055 = vadd.f32 %v335, %v1054
        %1056 = vmatmul.f32.gmra.mxu0 %v657
        %v1057 = vpop.f32.mrf.mxu0
        %v1058 = vadd.f32 %v335, %v1057
        %1059 = vmatmul.f32.gmra.mxu0 %v660
        %v1060 = vpop.f32.mrf.mxu0
        %v1061 = vadd.f32 %v335, %v1060
        %1062 = vmatmul.f32.gmra.mxu0 %v663
        %v1063 = vpop.f32.mrf.mxu0
        %v1064 = vadd.f32 %v335, %v1063
        %1065 = vmatmul.f32.gmra.mxu0 %v666
        %v1066 = vpop.f32.mrf.mxu0
        %v1067 = vadd.f32 %v335, %v1066
        %1068 = vmatmul.f32.gmra.mxu0 %v669
        %v1069 = vpop.f32.mrf.mxu0
        %v1070 = vadd.f32 %v335, %v1069
        %1071 = vmatmul.f32.gmra.mxu0 %v672
        %v1072 = vpop.f32.mrf.mxu0
        %v1073 = vadd.f32 %v335, %v1072
        %1074 = vmatmul.f32.gmra.mxu0 %v675
        %v1075 = vpop.f32.mrf.mxu0
        %v1076 = vadd.f32 %v335, %v1075
        %1077 = vmatmul.f32.gmra.mxu0 %v678
        %v1078 = vpop.f32.mrf.mxu0
        %v1079 = vadd.f32 %v335, %v1078
        %1080 = vmatmul.f32.gmra.mxu0 %v681
        %v1081 = vpop.f32.mrf.mxu0
        %v1082 = vadd.f32 %v335, %v1081
        %1083 = vmatmul.f32.gmra.mxu0 %v684
        %v1084 = vpop.f32.mrf.mxu0
        %v1085 = vadd.f32 %v335, %v1084
        %1086 = vmatmul.f32.gmra.mxu0 %v687
        %v1087 = vpop.f32.mrf.mxu0
        %v1088 = vadd.f32 %v335, %v1087
        %1089 = vmatmul.f32.gmra.mxu0 %v690
        %v1090 = vpop.f32.mrf.mxu0
        %v1091 = vadd.f32 %v335, %v1090
        %1092 = vmatmul.f32.gmra.mxu0 %v693
        %v1093 = vpop.f32.mrf.mxu0
        %v1094 = vadd.f32 %v335, %v1093
        %1095 = vmatmul.f32.gmra.mxu0 %v696
        %v1096 = vpop.f32.mrf.mxu0
        %v1097 = vadd.f32 %v335, %v1096
        %1098 = vmatmul.f32.gmra.mxu0 %v699
        %v1099 = vpop.f32.mrf.mxu0
        %v1100 = vadd.f32 %v335, %v1099
        %1101 = vmatmul.f32.gmra.mxu0 %v702
        %v1102 = vpop.f32.mrf.mxu0
        %v1103 = vadd.f32 %v335, %v1102
        %1104 = vmatmul.f32.gmra.mxu0 %v705
        %v1105 = vpop.f32.mrf.mxu0
        %v1106 = vadd.f32 %v335, %v1105
        %1107 = vmatmul.f32.gmra.mxu0 %v708
        %v1108 = vpop.f32.mrf.mxu0
        %v1109 = vadd.f32 %v335, %v1108
        %1110 = vmatmul.f32.gmra.mxu0 %v711
        %v1111 = vpop.f32.mrf.mxu0
        %v1112 = vadd.f32 %v335, %v1111
        %1113 = vmatmul.f32.gmra.mxu0 %v714
        %v1114 = vpop.f32.mrf.mxu0
        %v1115 = vadd.f32 %v335, %v1114
        %1116 = vmatmul.f32.gmra.mxu0 %v717
        %v1117 = vpop.f32.mrf.mxu0
        %v1118 = vadd.f32 %v335, %v1117
        %1119 = vmatmul.f32.gmra.mxu0 %v720
        %v1120 = vpop.f32.mrf.mxu0
        %v1121 = vadd.f32 %v335, %v1120
        %1122 = vdwg.mxu0
        %1123 = vst.msk [vmem:[%s195] sm:$0xff] %vm337, %v740
        %1124 = vst.msk [vmem:[%s195 + $0x8] sm:$0xff] %vm337, %v743
        %1125 = vst.msk [vmem:[%s195 + $0x20] sm:$0xff] %vm337, %v746
        %1126 = vst.msk [vmem:[%s195 + $0x28] sm:$0xff] %vm337, %v749
        %1127 = vst.msk [vmem:[%s195 + $0x40] sm:$0xff] %vm337, %v752
        %1128 = vst.msk [vmem:[%s195 + $0x48] sm:$0xff] %vm337, %v755
        %1129 = vst.msk [vmem:[%s195 + $0x60] sm:$0xff] %vm337, %v758
        %1130 = vst.msk [vmem:[%s195 + $0x68] sm:$0xff] %vm337, %v761
        %1131 = vst.msk [vmem:[%s195 + $0x80] sm:$0xff] %vm337, %v764
        %1132 = vst.msk [vmem:[%s195 + $0x88] sm:$0xff] %vm337, %v767
        %1133 = vst.msk [vmem:[%s195 + $0xa0] sm:$0xff] %vm337, %v770
        %1134 = vst.msk [vmem:[%s195 + $0xa8] sm:$0xff] %vm337, %v773
        %1135 = vst.msk [vmem:[%s195 + $0xc0] sm:$0xff] %vm337, %v776
        %1136 = vst.msk [vmem:[%s195 + $0xc8] sm:$0xff] %vm337, %v779
        %1137 = vst.msk [vmem:[%s195 + $0xe0] sm:$0xff] %vm337, %v782
        %1138 = vst.msk [vmem:[%s195 + $0xe8] sm:$0xff] %vm337, %v785
        %1139 = vst.msk [vmem:[%s195 + $0x100] sm:$0xff] %vm337, %v788
        %1140 = vst.msk [vmem:[%s195 + $0x108] sm:$0xff] %vm337, %v791
        %1141 = vst.msk [vmem:[%s195 + $0x120] sm:$0xff] %vm337, %v794
        %1142 = vst.msk [vmem:[%s195 + $0x128] sm:$0xff] %vm337, %v797
        %1143 = vst.msk [vmem:[%s195 + $0x140] sm:$0xff] %vm337, %v800
        %1144 = vst.msk [vmem:[%s195 + $0x148] sm:$0xff] %vm337, %v803
        %1145 = vst.msk [vmem:[%s195 + $0x160] sm:$0xff] %vm337, %v806
        %1146 = vst.msk [vmem:[%s195 + $0x168] sm:$0xff] %vm337, %v809
        %1147 = vst.msk [vmem:[%s195 + $0x180] sm:$0xff] %vm337, %v812
        %1148 = vst.msk [vmem:[%s195 + $0x188] sm:$0xff] %vm337, %v815
        %1149 = vst.msk [vmem:[%s195 + $0x1a0] sm:$0xff] %vm337, %v818
        %1150 = vst.msk [vmem:[%s195 + $0x1a8] sm:$0xff] %vm337, %v821
        %1151 = vst.msk [vmem:[%s195 + $0x1c0] sm:$0xff] %vm337, %v824
        %1152 = vst.msk [vmem:[%s195 + $0x1c8] sm:$0xff] %vm337, %v827
        %1153 = vst.msk [vmem:[%s195 + $0x1e0] sm:$0xff] %vm337, %v830
        %1154 = vst.msk [vmem:[%s195 + $0x1e8] sm:$0xff] %vm337, %v833
        %1155 = vst.msk [vmem:[%s195 + $0x200] sm:$0xff] %vm337, %v836
        %1156 = vst.msk [vmem:[%s195 + $0x208] sm:$0xff] %vm337, %v839
        %1157 = vst.msk [vmem:[%s195 + $0x220] sm:$0xff] %vm337, %v842
        %1158 = vst.msk [vmem:[%s195 + $0x228] sm:$0xff] %vm337, %v845
        %1159 = vst.msk [vmem:[%s195 + $0x240] sm:$0xff] %vm337, %v848
        %1160 = vst.msk [vmem:[%s195 + $0x248] sm:$0xff] %vm337, %v851
        %1161 = vst.msk [vmem:[%s195 + $0x260] sm:$0xff] %vm337, %v854
        %1162 = vst.msk [vmem:[%s195 + $0x268] sm:$0xff] %vm337, %v857
        %1163 = vst.msk [vmem:[%s195 + $0x280] sm:$0xff] %vm337, %v860
        %1164 = vst.msk [vmem:[%s195 + $0x288] sm:$0xff] %vm337, %v863
        %1165 = vst.msk [vmem:[%s195 + $0x2a0] sm:$0xff] %vm337, %v866
        %1166 = vst.msk [vmem:[%s195 + $0x2a8] sm:$0xff] %vm337, %v869
        %1167 = vst.msk [vmem:[%s195 + $0x2c0] sm:$0xff] %vm337, %v872
        %1168 = vst.msk [vmem:[%s195 + $0x2c8] sm:$0xff] %vm337, %v875
        %1169 = vst.msk [vmem:[%s195 + $0x2e0] sm:$0xff] %vm337, %v878
        %1170 = vst.msk [vmem:[%s195 + $0x2e8] sm:$0xff] %vm337, %v881
        %1171 = vst.msk [vmem:[%s195 + $0x300] sm:$0xff] %vm337, %v884
        %1172 = vst.msk [vmem:[%s195 + $0x308] sm:$0xff] %vm337, %v887
        %1173 = vst.msk [vmem:[%s195 + $0x320] sm:$0xff] %vm337, %v890
        %1174 = vst.msk [vmem:[%s195 + $0x328] sm:$0xff] %vm337, %v893
        %1175 = vst.msk [vmem:[%s195 + $0x340] sm:$0xff] %vm337, %v896
        %1176 = vst.msk [vmem:[%s195 + $0x348] sm:$0xff] %vm337, %v899
        %1177 = vst.msk [vmem:[%s195 + $0x360] sm:$0xff] %vm337, %v902
        %1178 = vst.msk [vmem:[%s195 + $0x368] sm:$0xff] %vm337, %v905
        %1179 = vst.msk [vmem:[%s195 + $0x380] sm:$0xff] %vm337, %v908
        %1180 = vst.msk [vmem:[%s195 + $0x388] sm:$0xff] %vm337, %v911
        %1181 = vst.msk [vmem:[%s195 + $0x3a0] sm:$0xff] %vm337, %v914
        %1182 = vst.msk [vmem:[%s195 + $0x3a8] sm:$0xff] %vm337, %v917
        %1183 = vst.msk [vmem:[%s195 + $0x3c0] sm:$0xff] %vm337, %v920
        %1184 = vst.msk [vmem:[%s195 + $0x3c8] sm:$0xff] %vm337, %v923
        %1185 = vst.msk [vmem:[%s195 + $0x3e0] sm:$0xff] %vm337, %v926
        %1186 = vst.msk [vmem:[%s195 + $0x3e8] sm:$0xff] %vm337, %v929
        %1187 = vst.msk [vmem:[%s195 + $0x400] sm:$0xff] %vm337, %v932
        %1188 = vst.msk [vmem:[%s195 + $0x408] sm:$0xff] %vm337, %v935
        %1189 = vst.msk [vmem:[%s195 + $0x420] sm:$0xff] %vm337, %v938
        %1190 = vst.msk [vmem:[%s195 + $0x428] sm:$0xff] %vm337, %v941
        %1191 = vst.msk [vmem:[%s195 + $0x440] sm:$0xff] %vm337, %v944
        %1192 = vst.msk [vmem:[%s195 + $0x448] sm:$0xff] %vm337, %v947
        %1193 = vst.msk [vmem:[%s195 + $0x460] sm:$0xff] %vm337, %v950
        %1194 = vst.msk [vmem:[%s195 + $0x468] sm:$0xff] %vm337, %v953
        %1195 = vst.msk [vmem:[%s195 + $0x480] sm:$0xff] %vm337, %v956
        %1196 = vst.msk [vmem:[%s195 + $0x488] sm:$0xff] %vm337, %v959
        %1197 = vst.msk [vmem:[%s195 + $0x4a0] sm:$0xff] %vm337, %v962
        %1198 = vst.msk [vmem:[%s195 + $0x4a8] sm:$0xff] %vm337, %v965
        %1199 = vst.msk [vmem:[%s195 + $0x4c0] sm:$0xff] %vm337, %v968
        %1200 = vst.msk [vmem:[%s195 + $0x4c8] sm:$0xff] %vm337, %v971
        %1201 = vst.msk [vmem:[%s195 + $0x4e0] sm:$0xff] %vm337, %v974
        %1202 = vst.msk [vmem:[%s195 + $0x4e8] sm:$0xff] %vm337, %v977
        %1203 = vst.msk [vmem:[%s195 + $0x500] sm:$0xff] %vm337, %v980
        %1204 = vst.msk [vmem:[%s195 + $0x508] sm:$0xff] %vm337, %v983
        %1205 = vst.msk [vmem:[%s195 + $0x520] sm:$0xff] %vm337, %v986
        %1206 = vst.msk [vmem:[%s195 + $0x528] sm:$0xff] %vm337, %v989
        %1207 = vst.msk [vmem:[%s195 + $0x540] sm:$0xff] %vm337, %v992
        %1208 = vst.msk [vmem:[%s195 + $0x548] sm:$0xff] %vm337, %v995
        %1209 = vst.msk [vmem:[%s195 + $0x560] sm:$0xff] %vm337, %v998
        %1210 = vst.msk [vmem:[%s195 + $0x568] sm:$0xff] %vm337, %v1001
        %1211 = vst.msk [vmem:[%s195 + $0x580] sm:$0xff] %vm337, %v1004
        %1212 = vst.msk [vmem:[%s195 + $0x588] sm:$0xff] %vm337, %v1007
        %1213 = vst.msk [vmem:[%s195 + $0x5a0] sm:$0xff] %vm337, %v1010
        %1214 = vst.msk [vmem:[%s195 + $0x5a8] sm:$0xff] %vm337, %v1013
        %1215 = vst.msk [vmem:[%s195 + $0x5c0] sm:$0xff] %vm337, %v1016
        %1216 = vst.msk [vmem:[%s195 + $0x5c8] sm:$0xff] %vm337, %v1019
        %1217 = vst.msk [vmem:[%s195 + $0x5e0] sm:$0xff] %vm337, %v1022
        %1218 = vst.msk [vmem:[%s195 + $0x5e8] sm:$0xff] %vm337, %v1025
        %1219 = vst.msk [vmem:[%s195 + $0x600] sm:$0xff] %vm337, %v1028
        %1220 = vst.msk [vmem:[%s195 + $0x608] sm:$0xff] %vm337, %v1031
        %1221 = vst.msk [vmem:[%s195 + $0x620] sm:$0xff] %vm337, %v1034
        %1222 = vst.msk [vmem:[%s195 + $0x628] sm:$0xff] %vm337, %v1037
        %1223 = vst.msk [vmem:[%s195 + $0x640] sm:$0xff] %vm337, %v1040
        %1224 = vst.msk [vmem:[%s195 + $0x648] sm:$0xff] %vm337, %v1043
        %1225 = vst.msk [vmem:[%s195 + $0x660] sm:$0xff] %vm337, %v1046
        %1226 = vst.msk [vmem:[%s195 + $0x668] sm:$0xff] %vm337, %v1049
        %1227 = vst.msk [vmem:[%s195 + $0x680] sm:$0xff] %vm337, %v1052
        %1228 = vst.msk [vmem:[%s195 + $0x688] sm:$0xff] %vm337, %v1055
        %1229 = vst.msk [vmem:[%s195 + $0x6a0] sm:$0xff] %vm337, %v1058
        %1230 = vst.msk [vmem:[%s195 + $0x6a8] sm:$0xff] %vm337, %v1061
        %1231 = vst.msk [vmem:[%s195 + $0x6c0] sm:$0xff] %vm337, %v1064
        %1232 = vst.msk [vmem:[%s195 + $0x6c8] sm:$0xff] %vm337, %v1067
        %1233 = vst.msk [vmem:[%s195 + $0x6e0] sm:$0xff] %vm337, %v1070
        %1234 = vst.msk [vmem:[%s195 + $0x6e8] sm:$0xff] %vm337, %v1073
        %1235 = vst.msk [vmem:[%s195 + $0x700] sm:$0xff] %vm337, %v1076
        %1236 = vst.msk [vmem:[%s195 + $0x708] sm:$0xff] %vm337, %v1079
        %1237 = vst.msk [vmem:[%s195 + $0x720] sm:$0xff] %vm337, %v1082
        %1238 = vst.msk [vmem:[%s195 + $0x728] sm:$0xff] %vm337, %v1085
        %1239 = vst.msk [vmem:[%s195 + $0x740] sm:$0xff] %vm337, %v1088
        %1240 = vst.msk [vmem:[%s195 + $0x748] sm:$0xff] %vm337, %v1091
        %1241 = vst.msk [vmem:[%s195 + $0x760] sm:$0xff] %vm337, %v1094
        %1242 = vst.msk [vmem:[%s195 + $0x768] sm:$0xff] %vm337, %v1097
        %1243 = vst.msk [vmem:[%s195 + $0x780] sm:$0xff] %vm337, %v1100
        %1244 = vst.msk [vmem:[%s195 + $0x788] sm:$0xff] %vm337, %v1103
        %1245 = vst.msk [vmem:[%s195 + $0x7a0] sm:$0xff] %vm337, %v1106
        %1246 = vst.msk [vmem:[%s195 + $0x7a8] sm:$0xff] %vm337, %v1109
        %1247 = vst.msk [vmem:[%s195 + $0x7c0] sm:$0xff] %vm337, %v1112
        %1248 = vst.msk [vmem:[%s195 + $0x7c8] sm:$0xff] %vm337, %v1115
        %1249 = vst.msk [vmem:[%s195 + $0x7e0] sm:$0xff] %vm337, %v1118
        %1250 = vst.msk [vmem:[%s195 + $0x7e8] sm:$0xff] %vm337, %v1121
        %1379 = vrot.lane.b32.xlu0 %v740, 64
        %v1380 = vpop.permute.xlu0 %1379
        %1381 = vrot.lane.b32.xlu0 %v743, 64
        %v1382 = vpop.permute.xlu0 %1381
        %1383 = vrot.lane.b32.xlu0 %v746, 64
        %v1384 = vpop.permute.xlu0 %1383
        %1385 = vrot.lane.b32.xlu0 %v749, 64
        %v1386 = vpop.permute.xlu0 %1385
        %1387 = vrot.lane.b32.xlu0 %v752, 64
        %v1388 = vpop.permute.xlu0 %1387
        %1389 = vrot.lane.b32.xlu0 %v755, 64
        %v1390 = vpop.permute.xlu0 %1389
        %1391 = vrot.lane.b32.xlu0 %v758, 64
        %v1392 = vpop.permute.xlu0 %1391
        %1393 = vrot.lane.b32.xlu0 %v761, 64
        %v1394 = vpop.permute.xlu0 %1393
        %1395 = vrot.lane.b32.xlu0 %v764, 64
        %v1396 = vpop.permute.xlu0 %1395
        %1397 = vrot.lane.b32.xlu0 %v767, 64
        %v1398 = vpop.permute.xlu0 %1397
        %1399 = vrot.lane.b32.xlu0 %v770, 64
        %v1400 = vpop.permute.xlu0 %1399
        %1401 = vrot.lane.b32.xlu0 %v773, 64
        %v1402 = vpop.permute.xlu0 %1401
        %1403 = vrot.lane.b32.xlu0 %v776, 64
        %v1404 = vpop.permute.xlu0 %1403
        %1405 = vrot.lane.b32.xlu0 %v779, 64
        %v1406 = vpop.permute.xlu0 %1405
        %1407 = vrot.lane.b32.xlu0 %v782, 64
        %v1408 = vpop.permute.xlu0 %1407
        %1409 = vrot.lane.b32.xlu0 %v785, 64
        %v1410 = vpop.permute.xlu0 %1409
        %1411 = vrot.lane.b32.xlu0 %v788, 64
        %v1412 = vpop.permute.xlu0 %1411
        %1413 = vrot.lane.b32.xlu0 %v791, 64
        %v1414 = vpop.permute.xlu0 %1413
        %1415 = vrot.lane.b32.xlu0 %v794, 64
        %v1416 = vpop.permute.xlu0 %1415
        %1417 = vrot.lane.b32.xlu0 %v797, 64
        %v1418 = vpop.permute.xlu0 %1417
        %1419 = vrot.lane.b32.xlu0 %v800, 64
        %v1420 = vpop.permute.xlu0 %1419
        %1421 = vrot.lane.b32.xlu0 %v803, 64
        %v1422 = vpop.permute.xlu0 %1421
        %1423 = vrot.lane.b32.xlu0 %v806, 64
        %v1424 = vpop.permute.xlu0 %1423
        %1425 = vrot.lane.b32.xlu0 %v809, 64
        %v1426 = vpop.permute.xlu0 %1425
        %1427 = vrot.lane.b32.xlu0 %v812, 64
        %v1428 = vpop.permute.xlu0 %1427
        %1429 = vrot.lane.b32.xlu0 %v815, 64
        %v1430 = vpop.permute.xlu0 %1429
        %1431 = vrot.lane.b32.xlu0 %v818, 64
        %v1432 = vpop.permute.xlu0 %1431
        %1433 = vrot.lane.b32.xlu0 %v821, 64
        %v1434 = vpop.permute.xlu0 %1433
        %1435 = vrot.lane.b32.xlu0 %v824, 64
        %v1436 = vpop.permute.xlu0 %1435
        %1437 = vrot.lane.b32.xlu0 %v827, 64
        %v1438 = vpop.permute.xlu0 %1437
        %1439 = vrot.lane.b32.xlu0 %v830, 64
        %v1440 = vpop.permute.xlu0 %1439
        %1441 = vrot.lane.b32.xlu0 %v833, 64
        %v1442 = vpop.permute.xlu0 %1441
        %1443 = vrot.lane.b32.xlu0 %v836, 64
        %v1444 = vpop.permute.xlu0 %1443
        %1445 = vrot.lane.b32.xlu0 %v839, 64
        %v1446 = vpop.permute.xlu0 %1445
        %1447 = vrot.lane.b32.xlu0 %v842, 64
        %v1448 = vpop.permute.xlu0 %1447
        %1449 = vrot.lane.b32.xlu0 %v845, 64
        %v1450 = vpop.permute.xlu0 %1449
        %1451 = vrot.lane.b32.xlu0 %v848, 64
        %v1452 = vpop.permute.xlu0 %1451
        %1453 = vrot.lane.b32.xlu0 %v851, 64
        %v1454 = vpop.permute.xlu0 %1453
        %1455 = vrot.lane.b32.xlu0 %v854, 64
        %v1456 = vpop.permute.xlu0 %1455
        %1457 = vrot.lane.b32.xlu0 %v857, 64
        %v1458 = vpop.permute.xlu0 %1457
        %1459 = vrot.lane.b32.xlu0 %v860, 64
        %v1460 = vpop.permute.xlu0 %1459
        %1461 = vrot.lane.b32.xlu0 %v863, 64
        %v1462 = vpop.permute.xlu0 %1461
        %1463 = vrot.lane.b32.xlu0 %v866, 64
        %v1464 = vpop.permute.xlu0 %1463
        %1465 = vrot.lane.b32.xlu0 %v869, 64
        %v1466 = vpop.permute.xlu0 %1465
        %1467 = vrot.lane.b32.xlu0 %v872, 64
        %v1468 = vpop.permute.xlu0 %1467
        %1469 = vrot.lane.b32.xlu0 %v875, 64
        %v1470 = vpop.permute.xlu0 %1469
        %1471 = vrot.lane.b32.xlu0 %v878, 64
        %v1472 = vpop.permute.xlu0 %1471
        %1473 = vrot.lane.b32.xlu0 %v881, 64
        %v1474 = vpop.permute.xlu0 %1473
        %1475 = vrot.lane.b32.xlu0 %v884, 64
        %v1476 = vpop.permute.xlu0 %1475
        %1477 = vrot.lane.b32.xlu0 %v887, 64
        %v1478 = vpop.permute.xlu0 %1477
        %1479 = vrot.lane.b32.xlu0 %v890, 64
        %v1480 = vpop.permute.xlu0 %1479
        %1481 = vrot.lane.b32.xlu0 %v893, 64
        %v1482 = vpop.permute.xlu0 %1481
        %1483 = vrot.lane.b32.xlu0 %v896, 64
        %v1484 = vpop.permute.xlu0 %1483
        %1485 = vrot.lane.b32.xlu0 %v899, 64
        %v1486 = vpop.permute.xlu0 %1485
        %1487 = vrot.lane.b32.xlu0 %v902, 64
        %v1488 = vpop.permute.xlu0 %1487
        %1489 = vrot.lane.b32.xlu0 %v905, 64
        %v1490 = vpop.permute.xlu0 %1489
        %1491 = vrot.lane.b32.xlu0 %v908, 64
        %v1492 = vpop.permute.xlu0 %1491
        %1493 = vrot.lane.b32.xlu0 %v911, 64
        %v1494 = vpop.permute.xlu0 %1493
        %1495 = vrot.lane.b32.xlu0 %v914, 64
        %v1496 = vpop.permute.xlu0 %1495
        %1497 = vrot.lane.b32.xlu0 %v917, 64
        %v1498 = vpop.permute.xlu0 %1497
        %1499 = vrot.lane.b32.xlu0 %v920, 64
        %v1500 = vpop.permute.xlu0 %1499
        %1501 = vrot.lane.b32.xlu0 %v923, 64
        %v1502 = vpop.permute.xlu0 %1501
        %1503 = vrot.lane.b32.xlu0 %v926, 64
        %v1504 = vpop.permute.xlu0 %1503
        %1505 = vrot.lane.b32.xlu0 %v929, 64
        %v1506 = vpop.permute.xlu0 %1505
        %1507 = vrot.lane.b32.xlu0 %v932, 64
        %v1508 = vpop.permute.xlu0 %1507
        %1509 = vrot.lane.b32.xlu0 %v935, 64
        %v1510 = vpop.permute.xlu0 %1509
        %1511 = vrot.lane.b32.xlu0 %v938, 64
        %v1512 = vpop.permute.xlu0 %1511
        %1513 = vrot.lane.b32.xlu0 %v941, 64
        %v1514 = vpop.permute.xlu0 %1513
        %1515 = vrot.lane.b32.xlu0 %v944, 64
        %v1516 = vpop.permute.xlu0 %1515
        %1517 = vrot.lane.b32.xlu0 %v947, 64
        %v1518 = vpop.permute.xlu0 %1517
        %1519 = vrot.lane.b32.xlu0 %v950, 64
        %v1520 = vpop.permute.xlu0 %1519
        %1521 = vrot.lane.b32.xlu0 %v953, 64
        %v1522 = vpop.permute.xlu0 %1521
        %1523 = vrot.lane.b32.xlu0 %v956, 64
        %v1524 = vpop.permute.xlu0 %1523
        %1525 = vrot.lane.b32.xlu0 %v959, 64
        %v1526 = vpop.permute.xlu0 %1525
        %1527 = vrot.lane.b32.xlu0 %v962, 64
        %v1528 = vpop.permute.xlu0 %1527
        %1529 = vrot.lane.b32.xlu0 %v965, 64
        %v1530 = vpop.permute.xlu0 %1529
        %1531 = vrot.lane.b32.xlu0 %v968, 64
        %v1532 = vpop.permute.xlu0 %1531
        %1533 = vrot.lane.b32.xlu0 %v971, 64
        %v1534 = vpop.permute.xlu0 %1533
        %1535 = vrot.lane.b32.xlu0 %v974, 64
        %v1536 = vpop.permute.xlu0 %1535
        %1537 = vrot.lane.b32.xlu0 %v977, 64
        %v1538 = vpop.permute.xlu0 %1537
        %1539 = vrot.lane.b32.xlu0 %v980, 64
        %v1540 = vpop.permute.xlu0 %1539
        %1541 = vrot.lane.b32.xlu0 %v983, 64
        %v1542 = vpop.permute.xlu0 %1541
        %1543 = vrot.lane.b32.xlu0 %v986, 64
        %v1544 = vpop.permute.xlu0 %1543
        %1545 = vrot.lane.b32.xlu0 %v989, 64
        %v1546 = vpop.permute.xlu0 %1545
        %1547 = vrot.lane.b32.xlu0 %v992, 64
        %v1548 = vpop.permute.xlu0 %1547
        %1549 = vrot.lane.b32.xlu0 %v995, 64
        %v1550 = vpop.permute.xlu0 %1549
        %1551 = vrot.lane.b32.xlu0 %v998, 64
        %v1552 = vpop.permute.xlu0 %1551
        %1553 = vrot.lane.b32.xlu0 %v1001, 64
        %v1554 = vpop.permute.xlu0 %1553
        %1555 = vrot.lane.b32.xlu0 %v1004, 64
        %v1556 = vpop.permute.xlu0 %1555
        %1557 = vrot.lane.b32.xlu0 %v1007, 64
        %v1558 = vpop.permute.xlu0 %1557
        %1559 = vrot.lane.b32.xlu0 %v1010, 64
        %v1560 = vpop.permute.xlu0 %1559
        %1561 = vrot.lane.b32.xlu0 %v1013, 64
        %v1562 = vpop.permute.xlu0 %1561
        %1563 = vrot.lane.b32.xlu0 %v1016, 64
        %v1564 = vpop.permute.xlu0 %1563
        %1565 = vrot.lane.b32.xlu0 %v1019, 64
        %v1566 = vpop.permute.xlu0 %1565
        %1567 = vrot.lane.b32.xlu0 %v1022, 64
        %v1568 = vpop.permute.xlu0 %1567
        %1569 = vrot.lane.b32.xlu0 %v1025, 64
        %v1570 = vpop.permute.xlu0 %1569
        %1571 = vrot.lane.b32.xlu0 %v1028, 64
        %v1572 = vpop.permute.xlu0 %1571
        %1573 = vrot.lane.b32.xlu0 %v1031, 64
        %v1574 = vpop.permute.xlu0 %1573
        %1575 = vrot.lane.b32.xlu0 %v1034, 64
        %v1576 = vpop.permute.xlu0 %1575
        %1577 = vrot.lane.b32.xlu0 %v1037, 64
        %v1578 = vpop.permute.xlu0 %1577
        %1579 = vrot.lane.b32.xlu0 %v1040, 64
        %v1580 = vpop.permute.xlu0 %1579
        %1581 = vrot.lane.b32.xlu0 %v1043, 64
        %v1582 = vpop.permute.xlu0 %1581
        %1583 = vrot.lane.b32.xlu0 %v1046, 64
        %v1584 = vpop.permute.xlu0 %1583
        %1585 = vrot.lane.b32.xlu0 %v1049, 64
        %v1586 = vpop.permute.xlu0 %1585
        %1587 = vrot.lane.b32.xlu0 %v1052, 64
        %v1588 = vpop.permute.xlu0 %1587
        %1589 = vrot.lane.b32.xlu0 %v1055, 64
        %v1590 = vpop.permute.xlu0 %1589
        %1591 = vrot.lane.b32.xlu0 %v1058, 64
        %v1592 = vpop.permute.xlu0 %1591
        %1593 = vrot.lane.b32.xlu0 %v1061, 64
        %v1594 = vpop.permute.xlu0 %1593
        %1595 = vrot.lane.b32.xlu0 %v1064, 64
        %v1596 = vpop.permute.xlu0 %1595
        %1597 = vrot.lane.b32.xlu0 %v1067, 64
        %v1598 = vpop.permute.xlu0 %1597
        %1599 = vrot.lane.b32.xlu0 %v1070, 64
        %v1600 = vpop.permute.xlu0 %1599
        %1601 = vrot.lane.b32.xlu0 %v1073, 64
        %v1602 = vpop.permute.xlu0 %1601
        %1603 = vrot.lane.b32.xlu0 %v1076, 64
        %v1604 = vpop.permute.xlu0 %1603
        %1605 = vrot.lane.b32.xlu0 %v1079, 64
        %v1606 = vpop.permute.xlu0 %1605
        %1607 = vrot.lane.b32.xlu0 %v1082, 64
        %v1608 = vpop.permute.xlu0 %1607
        %1609 = vrot.lane.b32.xlu0 %v1085, 64
        %v1610 = vpop.permute.xlu0 %1609
        %1611 = vrot.lane.b32.xlu0 %v1088, 64
        %v1612 = vpop.permute.xlu0 %1611
        %1613 = vrot.lane.b32.xlu0 %v1091, 64
        %v1614 = vpop.permute.xlu0 %1613
        %1615 = vrot.lane.b32.xlu0 %v1094, 64
        %v1616 = vpop.permute.xlu0 %1615
        %1617 = vrot.lane.b32.xlu0 %v1097, 64
        %v1618 = vpop.permute.xlu0 %1617
        %1619 = vrot.lane.b32.xlu0 %v1100, 64
        %v1620 = vpop.permute.xlu0 %1619
        %1621 = vrot.lane.b32.xlu0 %v1103, 64
        %v1622 = vpop.permute.xlu0 %1621
        %1623 = vrot.lane.b32.xlu0 %v1106, 64
        %v1624 = vpop.permute.xlu0 %1623
        %1625 = vrot.lane.b32.xlu0 %v1109, 64
        %v1626 = vpop.permute.xlu0 %1625
        %1627 = vrot.lane.b32.xlu0 %v1112, 64
        %v1628 = vpop.permute.xlu0 %1627
        %1629 = vrot.lane.b32.xlu0 %v1115, 64
        %v1630 = vpop.permute.xlu0 %1629
        %1631 = vrot.lane.b32.xlu0 %v1118, 64
        %v1632 = vpop.permute.xlu0 %1631
        %1633 = vrot.lane.b32.xlu0 %v1121, 64
        %v1634 = vpop.permute.xlu0 %1633
        %s1763 = scalar_lea.vmem %s195, 16
        %1764 = vst.msk [vmem:[%s1763] sm:$0xff] %vm337, %v1380
        %1765 = vst.msk [vmem:[%s1763 + $0x8] sm:$0xff] %vm337, %v1382
        %1766 = vst.msk [vmem:[%s1763 + $0x20] sm:$0xff] %vm337, %v1384
        %1767 = vst.msk [vmem:[%s1763 + $0x28] sm:$0xff] %vm337, %v1386
        %1768 = vst.msk [vmem:[%s1763 + $0x40] sm:$0xff] %vm337, %v1388
        %1769 = vst.msk [vmem:[%s1763 + $0x48] sm:$0xff] %vm337, %v1390
        %1770 = vst.msk [vmem:[%s1763 + $0x60] sm:$0xff] %vm337, %v1392
        %1771 = vst.msk [vmem:[%s1763 + $0x68] sm:$0xff] %vm337, %v1394
        %1772 = vst.msk [vmem:[%s1763 + $0x80] sm:$0xff] %vm337, %v1396
        %1773 = vst.msk [vmem:[%s1763 + $0x88] sm:$0xff] %vm337, %v1398
        %1774 = vst.msk [vmem:[%s1763 + $0xa0] sm:$0xff] %vm337, %v1400
        %1775 = vst.msk [vmem:[%s1763 + $0xa8] sm:$0xff] %vm337, %v1402
        %1776 = vst.msk [vmem:[%s1763 + $0xc0] sm:$0xff] %vm337, %v1404
        %1777 = vst.msk [vmem:[%s1763 + $0xc8] sm:$0xff] %vm337, %v1406
        %1778 = vst.msk [vmem:[%s1763 + $0xe0] sm:$0xff] %vm337, %v1408
        %1779 = vst.msk [vmem:[%s1763 + $0xe8] sm:$0xff] %vm337, %v1410
        %1780 = vst.msk [vmem:[%s1763 + $0x100] sm:$0xff] %vm337, %v1412
        %1781 = vst.msk [vmem:[%s1763 + $0x108] sm:$0xff] %vm337, %v1414
        %1782 = vst.msk [vmem:[%s1763 + $0x120] sm:$0xff] %vm337, %v1416
        %1783 = vst.msk [vmem:[%s1763 + $0x128] sm:$0xff] %vm337, %v1418
        %1784 = vst.msk [vmem:[%s1763 + $0x140] sm:$0xff] %vm337, %v1420
        %1785 = vst.msk [vmem:[%s1763 + $0x148] sm:$0xff] %vm337, %v1422
        %1786 = vst.msk [vmem:[%s1763 + $0x160] sm:$0xff] %vm337, %v1424
        %1787 = vst.msk [vmem:[%s1763 + $0x168] sm:$0xff] %vm337, %v1426
        %1788 = vst.msk [vmem:[%s1763 + $0x180] sm:$0xff] %vm337, %v1428
        %1789 = vst.msk [vmem:[%s1763 + $0x188] sm:$0xff] %vm337, %v1430
        %1790 = vst.msk [vmem:[%s1763 + $0x1a0] sm:$0xff] %vm337, %v1432
        %1791 = vst.msk [vmem:[%s1763 + $0x1a8] sm:$0xff] %vm337, %v1434
        %1792 = vst.msk [vmem:[%s1763 + $0x1c0] sm:$0xff] %vm337, %v1436
        %1793 = vst.msk [vmem:[%s1763 + $0x1c8] sm:$0xff] %vm337, %v1438
        %1794 = vst.msk [vmem:[%s1763 + $0x1e0] sm:$0xff] %vm337, %v1440
        %1795 = vst.msk [vmem:[%s1763 + $0x1e8] sm:$0xff] %vm337, %v1442
        %1796 = vst.msk [vmem:[%s1763 + $0x200] sm:$0xff] %vm337, %v1444
        %1797 = vst.msk [vmem:[%s1763 + $0x208] sm:$0xff] %vm337, %v1446
        %1798 = vst.msk [vmem:[%s1763 + $0x220] sm:$0xff] %vm337, %v1448
        %1799 = vst.msk [vmem:[%s1763 + $0x228] sm:$0xff] %vm337, %v1450
        %1800 = vst.msk [vmem:[%s1763 + $0x240] sm:$0xff] %vm337, %v1452
        %1801 = vst.msk [vmem:[%s1763 + $0x248] sm:$0xff] %vm337, %v1454
        %1802 = vst.msk [vmem:[%s1763 + $0x260] sm:$0xff] %vm337, %v1456
        %1803 = vst.msk [vmem:[%s1763 + $0x268] sm:$0xff] %vm337, %v1458
        %1804 = vst.msk [vmem:[%s1763 + $0x280] sm:$0xff] %vm337, %v1460
        %1805 = vst.msk [vmem:[%s1763 + $0x288] sm:$0xff] %vm337, %v1462
        %1806 = vst.msk [vmem:[%s1763 + $0x2a0] sm:$0xff] %vm337, %v1464
        %1807 = vst.msk [vmem:[%s1763 + $0x2a8] sm:$0xff] %vm337, %v1466
        %1808 = vst.msk [vmem:[%s1763 + $0x2c0] sm:$0xff] %vm337, %v1468
        %1809 = vst.msk [vmem:[%s1763 + $0x2c8] sm:$0xff] %vm337, %v1470
        %1810 = vst.msk [vmem:[%s1763 + $0x2e0] sm:$0xff] %vm337, %v1472
        %1811 = vst.msk [vmem:[%s1763 + $0x2e8] sm:$0xff] %vm337, %v1474
        %1812 = vst.msk [vmem:[%s1763 + $0x300] sm:$0xff] %vm337, %v1476
        %1813 = vst.msk [vmem:[%s1763 + $0x308] sm:$0xff] %vm337, %v1478
        %1814 = vst.msk [vmem:[%s1763 + $0x320] sm:$0xff] %vm337, %v1480
        %1815 = vst.msk [vmem:[%s1763 + $0x328] sm:$0xff] %vm337, %v1482
        %1816 = vst.msk [vmem:[%s1763 + $0x340] sm:$0xff] %vm337, %v1484
        %1817 = vst.msk [vmem:[%s1763 + $0x348] sm:$0xff] %vm337, %v1486
        %1818 = vst.msk [vmem:[%s1763 + $0x360] sm:$0xff] %vm337, %v1488
        %1819 = vst.msk [vmem:[%s1763 + $0x368] sm:$0xff] %vm337, %v1490
        %1820 = vst.msk [vmem:[%s1763 + $0x380] sm:$0xff] %vm337, %v1492
        %1821 = vst.msk [vmem:[%s1763 + $0x388] sm:$0xff] %vm337, %v1494
        %1822 = vst.msk [vmem:[%s1763 + $0x3a0] sm:$0xff] %vm337, %v1496
        %1823 = vst.msk [vmem:[%s1763 + $0x3a8] sm:$0xff] %vm337, %v1498
        %1824 = vst.msk [vmem:[%s1763 + $0x3c0] sm:$0xff] %vm337, %v1500
        %1825 = vst.msk [vmem:[%s1763 + $0x3c8] sm:$0xff] %vm337, %v1502
        %1826 = vst.msk [vmem:[%s1763 + $0x3e0] sm:$0xff] %vm337, %v1504
        %1827 = vst.msk [vmem:[%s1763 + $0x3e8] sm:$0xff] %vm337, %v1506
        %1828 = vst.msk [vmem:[%s1763 + $0x400] sm:$0xff] %vm337, %v1508
        %1829 = vst.msk [vmem:[%s1763 + $0x408] sm:$0xff] %vm337, %v1510
        %1830 = vst.msk [vmem:[%s1763 + $0x420] sm:$0xff] %vm337, %v1512
        %1831 = vst.msk [vmem:[%s1763 + $0x428] sm:$0xff] %vm337, %v1514
        %1832 = vst.msk [vmem:[%s1763 + $0x440] sm:$0xff] %vm337, %v1516
        %1833 = vst.msk [vmem:[%s1763 + $0x448] sm:$0xff] %vm337, %v1518
        %1834 = vst.msk [vmem:[%s1763 + $0x460] sm:$0xff] %vm337, %v1520
        %1835 = vst.msk [vmem:[%s1763 + $0x468] sm:$0xff] %vm337, %v1522
        %1836 = vst.msk [vmem:[%s1763 + $0x480] sm:$0xff] %vm337, %v1524
        %1837 = vst.msk [vmem:[%s1763 + $0x488] sm:$0xff] %vm337, %v1526
        %1838 = vst.msk [vmem:[%s1763 + $0x4a0] sm:$0xff] %vm337, %v1528
        %1839 = vst.msk [vmem:[%s1763 + $0x4a8] sm:$0xff] %vm337, %v1530
        %1840 = vst.msk [vmem:[%s1763 + $0x4c0] sm:$0xff] %vm337, %v1532
        %1841 = vst.msk [vmem:[%s1763 + $0x4c8] sm:$0xff] %vm337, %v1534
        %1842 = vst.msk [vmem:[%s1763 + $0x4e0] sm:$0xff] %vm337, %v1536
        %1843 = vst.msk [vmem:[%s1763 + $0x4e8] sm:$0xff] %vm337, %v1538
        %1844 = vst.msk [vmem:[%s1763 + $0x500] sm:$0xff] %vm337, %v1540
        %1845 = vst.msk [vmem:[%s1763 + $0x508] sm:$0xff] %vm337, %v1542
        %1846 = vst.msk [vmem:[%s1763 + $0x520] sm:$0xff] %vm337, %v1544
        %1847 = vst.msk [vmem:[%s1763 + $0x528] sm:$0xff] %vm337, %v1546
        %1848 = vst.msk [vmem:[%s1763 + $0x540] sm:$0xff] %vm337, %v1548
        %1849 = vst.msk [vmem:[%s1763 + $0x548] sm:$0xff] %vm337, %v1550
        %1850 = vst.msk [vmem:[%s1763 + $0x560] sm:$0xff] %vm337, %v1552
        %1851 = vst.msk [vmem:[%s1763 + $0x568] sm:$0xff] %vm337, %v1554
        %1852 = vst.msk [vmem:[%s1763 + $0x580] sm:$0xff] %vm337, %v1556
        %1853 = vst.msk [vmem:[%s1763 + $0x588] sm:$0xff] %vm337, %v1558
        %1854 = vst.msk [vmem:[%s1763 + $0x5a0] sm:$0xff] %vm337, %v1560
        %1855 = vst.msk [vmem:[%s1763 + $0x5a8] sm:$0xff] %vm337, %v1562
        %1856 = vst.msk [vmem:[%s1763 + $0x5c0] sm:$0xff] %vm337, %v1564
        %1857 = vst.msk [vmem:[%s1763 + $0x5c8] sm:$0xff] %vm337, %v1566
        %1858 = vst.msk [vmem:[%s1763 + $0x5e0] sm:$0xff] %vm337, %v1568
        %1859 = vst.msk [vmem:[%s1763 + $0x5e8] sm:$0xff] %vm337, %v1570
        %1860 = vst.msk [vmem:[%s1763 + $0x600] sm:$0xff] %vm337, %v1572
        %1861 = vst.msk [vmem:[%s1763 + $0x608] sm:$0xff] %vm337, %v1574
        %1862 = vst.msk [vmem:[%s1763 + $0x620] sm:$0xff] %vm337, %v1576
        %1863 = vst.msk [vmem:[%s1763 + $0x628] sm:$0xff] %vm337, %v1578
        %1864 = vst.msk [vmem:[%s1763 + $0x640] sm:$0xff] %vm337, %v1580
        %1865 = vst.msk [vmem:[%s1763 + $0x648] sm:$0xff] %vm337, %v1582
        %1866 = vst.msk [vmem:[%s1763 + $0x660] sm:$0xff] %vm337, %v1584
        %1867 = vst.msk [vmem:[%s1763 + $0x668] sm:$0xff] %vm337, %v1586
        %1868 = vst.msk [vmem:[%s1763 + $0x680] sm:$0xff] %vm337, %v1588
        %1869 = vst.msk [vmem:[%s1763 + $0x688] sm:$0xff] %vm337, %v1590
        %1870 = vst.msk [vmem:[%s1763 + $0x6a0] sm:$0xff] %vm337, %v1592
        %1871 = vst.msk [vmem:[%s1763 + $0x6a8] sm:$0xff] %vm337, %v1594
        %1872 = vst.msk [vmem:[%s1763 + $0x6c0] sm:$0xff] %vm337, %v1596
        %1873 = vst.msk [vmem:[%s1763 + $0x6c8] sm:$0xff] %vm337, %v1598
        %1874 = vst.msk [vmem:[%s1763 + $0x6e0] sm:$0xff] %vm337, %v1600
        %1875 = vst.msk [vmem:[%s1763 + $0x6e8] sm:$0xff] %vm337, %v1602
        %1876 = vst.msk [vmem:[%s1763 + $0x700] sm:$0xff] %vm337, %v1604
        %1877 = vst.msk [vmem:[%s1763 + $0x708] sm:$0xff] %vm337, %v1606
        %1878 = vst.msk [vmem:[%s1763 + $0x720] sm:$0xff] %vm337, %v1608
        %1879 = vst.msk [vmem:[%s1763 + $0x728] sm:$0xff] %vm337, %v1610
        %1880 = vst.msk [vmem:[%s1763 + $0x740] sm:$0xff] %vm337, %v1612
        %1881 = vst.msk [vmem:[%s1763 + $0x748] sm:$0xff] %vm337, %v1614
        %1882 = vst.msk [vmem:[%s1763 + $0x760] sm:$0xff] %vm337, %v1616
        %1883 = vst.msk [vmem:[%s1763 + $0x768] sm:$0xff] %vm337, %v1618
        %1884 = vst.msk [vmem:[%s1763 + $0x780] sm:$0xff] %vm337, %v1620
        %1885 = vst.msk [vmem:[%s1763 + $0x788] sm:$0xff] %vm337, %v1622
        %1886 = vst.msk [vmem:[%s1763 + $0x7a0] sm:$0xff] %vm337, %v1624
        %1887 = vst.msk [vmem:[%s1763 + $0x7a8] sm:$0xff] %vm337, %v1626
        %1888 = vst.msk [vmem:[%s1763 + $0x7c0] sm:$0xff] %vm337, %v1628
        %1889 = vst.msk [vmem:[%s1763 + $0x7c8] sm:$0xff] %vm337, %v1630
        %1890 = vst.msk [vmem:[%s1763 + $0x7e0] sm:$0xff] %vm337, %v1632
        %1891 = vst.msk [vmem:[%s1763 + $0x7e8] sm:$0xff] %vm337, %v1634
        %s1892 = smul.u32 64, %s17
        %p1893 = scmp.lt.s32.totalorder %s1892, 127
        %s1894 = scalar_select %p1893, %s1892, 127
        %s1895 = smul.addr %s1894, 4
        %s1896 = smul.addr %s1895, 8
        %s1897 = scalar_lea.vmem %s3, %s1896
        // Predicated region
        $region37: #{up_no_skipconn3d_forward.1} parent=31 // pred_check
          %p1898 = pneg %p103
        $region38: #{up_no_skipconn3d_forward.1} parent=31 // pred_check_branch
          %1900 = sbr.rel (%p1898) target = $region40
        $region39: #{up_no_skipconn3d_forward.1} parent=31 // pred_region
          %s1901 = smul.u32 64, %s17
        $region40: #{up_no_skipconn3d_forward.1} parent=31 // pred_fallthru
          _
      $region32: #{up_no_skipconn3d_forward.1} parent=5 // pred_fallthru
        _
      %p1902 = scmp.le.s32.totalorder 2, %s12
      // Predicated region
      $region41: #{up_no_skipconn3d_forward.1} parent=5 // pred_check
        %p1903 = pneg %p1902
      $region42: #{up_no_skipconn3d_forward.1} parent=5 // pred_check_branch
        %1905 = sbr.rel (%p1903) target = $region44
      $region43: #{up_no_skipconn3d_forward.1} parent=5 // pred_region
        %s1906 = ssub.s32 %s12, 2
        // Predicated region
        $region45: #{up_no_skipconn3d_forward.1} parent=43 // pred_check
          %p1907 = pneg %p109
        $region46: #{up_no_skipconn3d_forward.1} parent=43 // pred_check_branch
          %1909 = sbr.rel (%p1907) target = $region48
        $region47: #{up_no_skipconn3d_forward.1} parent=43 // pred_region
          %s1910 = smul.u32 64, %s18
          %p1911 = scmp.lt.s32.totalorder %s1910, 127
          %s1912 = scalar_select %p1911, %s1910, 127
          %s1913 = smul.addr %s1912, 4
          %s1914 = smul.addr %s1913, 8
          %s1915 = scalar_lea.vmem %s3, %s1914
        $region48: #{up_no_skipconn3d_forward.1} parent=43 // pred_fallthru
          _
      $region44: #{up_no_skipconn3d_forward.1} parent=5 // pred_fallthru
        _
    $region6: #{up_no_skipconn3d_forward.1} parent=1 // loop_footer
      %s16 = sadd.s32 1, %s12
    $region7: #{up_no_skipconn3d_forward.1} parent=1 // loop_footer_branch
      %11 = sbr.rel target = $region3
    $region8: #{up_no_skipconn3d_forward.1} parent=1 // loop_exit
      _
    %1916 = vsyncpa [#allocation3], 1
    %s1917 = scalar_lea.sflag [#allocation3], 1
    %1918 = vsyncpa %s1917, 1

</llo_original>
